<compile_context>
chip_gen: v6e
topology: v6e:2x2x1
jax: 0.10.0
libtpu: 0.0.40
codegen_flags: <defaults>
</compile_context>

<pallas_src>
import jax
import jax.numpy as jnp
from jax.experimental import pallas as pl
from jax.experimental.pallas import tpu as pltpu

# ---- static model dims ----
B = 2          # batch
S = 8          # sequence length
H = 32         # hidden_units
F = 64         # ffn_hidden
HEADS = 4
DH = H // HEADS
LN_EPS = 1e-5

LANES = 128
OUT_ROWS = (S * H) // LANES        # 2   lane-dense output rows per batch
ROWS_PER_OUT_ROW = LANES // H      # 4   (S,H) rows packed per 128-lane row


def _layer_norm(x, gamma, beta):
    mu = jnp.mean(x, axis=-1, keepdims=True)
    var = jnp.mean((x - mu) ** 2, axis=-1, keepdims=True)
    return (x - mu) * jax.lax.rsqrt(var + LN_EPS) * gamma + beta


def encoder_layer_kernel(x_ref, wqkv_ref, wo_ref, w1_ref, w2_ref, vecs_ref, o_ref):
    # Current block: one batch element, full (S, H) tile in VMEM.
    x = x_ref[0].astype(jnp.float32)                        # (S, H)

    # Packed vector slab: rows = [bqkv | bo | gamma | beta | b1 | b2] (zero-padded to 3H lanes).
    vecs = vecs_ref[...]                                    # (6, 3H)
    bqkv = vecs[0:1, :]                                     # (1, 3H)
    bo = vecs[1:2, :H]                                      # (1, H)
    gamma = vecs[2:3, :H]                                   # (1, H)
    beta = vecs[3:4, :H]                                    # (1, H)
    b1 = vecs[4:5, :F]                                      # (1, F)
    b2 = vecs[5:6, :H]                                      # (1, H)

    # ---------- Multi-head self-attention (fused QKV projection) ----------
    qkv = jnp.dot(x, wqkv_ref[...], preferred_element_type=jnp.float32) + bqkv   # (S, 3H)

    scale = 1.0 / (float(DH) ** 0.5)
    attn = jnp.zeros((S, H), jnp.float32)
    for h in range(HEADS):                                  # static head loop
        lo = h * DH
        qh = qkv[:, lo:lo + DH]                             # (S, DH)
        kh = qkv[:, H + lo:H + lo + DH]                     # (S, DH)
        vh = qkv[:, 2 * H + lo:2 * H + lo + DH]             # (S, DH)
        # q @ k^T without an explicit transpose: contract the DH axes directly.
        scores = jax.lax.dot_general(
            qh, kh, (((1,), (1,)), ((), ())),
            preferred_element_type=jnp.float32) * scale     # (S, S)
        m = jnp.max(scores, axis=-1, keepdims=True)
        p = jnp.exp(scores - m)
        p = p / jnp.sum(p, axis=-1, keepdims=True)          # softmax over keys
        ctx_h = jnp.dot(p, vh, preferred_element_type=jnp.float32)           # (S, DH)
        # Fuse the output projection per head -> no ctx concatenate is ever built.
        attn = attn + jnp.dot(ctx_h, wo_ref[lo:lo + DH, :],
                              preferred_element_type=jnp.float32)            # (S, H)
    attn_out = attn + bo

    # dropout (eval) == identity
    x1 = _layer_norm(x + attn_out, gamma, beta)             # (S, H)

    # ---------- Feed-forward network ----------
    hdn = jnp.dot(x1, w1_ref[...], preferred_element_type=jnp.float32) + b1
    hdn = jnp.maximum(hdn, 0.0)                             # ReLU
    ffn_out = jnp.dot(hdn, w2_ref[...], preferred_element_type=jnp.float32) + b2

    # dropout (eval) == identity
    x2 = _layer_norm(x1 + ffn_out, gamma, beta).astype(o_ref.dtype)          # (S, H)

    # ---------- Lane-dense store: pack (S, H) rows into (OUT_ROWS, 128) ----------
    lane_rows = []
    for r in range(OUT_ROWS):
        pieces = [x2[r * ROWS_PER_OUT_ROW + c:r * ROWS_PER_OUT_ROW + c + 1, :]
                  for c in range(ROWS_PER_OUT_ROW)]
        lane_rows.append(jnp.concatenate(pieces, axis=1))   # (1, 128)
    o_ref[0] = jnp.concatenate(lane_rows, axis=0)           # (OUT_ROWS, 128)


def encoder_layer(x, params):
    """x: (B, S, H) float32. params: dict of weights (see init_params)."""
    # One-time (wrapper-side) packing: fused QKV weight + one small vector slab.
    wqkv = jnp.concatenate([params["wq"], params["wk"], params["wv"]], axis=1)   # (H, 3H)
    bqkv = jnp.concatenate([params["bq"], params["bk"], params["bv"]], axis=1)   # (1, 3H)
    wide = 3 * H
    pad = lambda v: jnp.pad(v, ((0, 0), (0, wide - v.shape[1])))
    vecs = jnp.concatenate(
        [bqkv, pad(params["bo"]), pad(params["gamma"]), pad(params["beta"]),
         pad(params["b1"]), pad(params["b2"])], axis=0)                          # (6, 3H)

    full = lambda shape: pl.BlockSpec(shape, lambda b: (0,) * len(shape))

    out = pl.pallas_call(
        encoder_layer_kernel,
        out_shape=jax.ShapeDtypeStruct((B, OUT_ROWS, LANES), x.dtype),
        grid_spec=pltpu.PrefetchScalarGridSpec(
            num_scalar_prefetch=0,
            grid=(B,),
            in_specs=[
                pl.BlockSpec((1, S, H), lambda b: (b, 0, 0)),   # x, one batch per step
                full((H, 3 * H)),                               # fused Wqkv
                full((H, H)),                                   # Wo
                full((H, F)),                                   # W1
                full((F, H)),                                   # W2
                full((6, 3 * H)),                               # packed biases / gamma / beta
            ],
            out_specs=pl.BlockSpec((1, OUT_ROWS, LANES), lambda b: (b, 0, 0)),
        ),
        compiler_params=pltpu.CompilerParams(
            dimension_semantics=("parallel",)),                 # shards batches on v7x's 2 TCs
    )(x, wqkv, params["wo"], params["w1"], params["w2"], vecs)

    # Lane-dense slab back to the natural (B, S, H) layout (row-major view, free).
    return out.reshape(B, S, H)


def encoder_layer_ref(x, p):
    """Pure-JAX reference (same math) for a correctness check."""
    def one(xb):
        q = xb @ p["wq"] + p["bq"][0]
        k = xb @ p["wk"] + p["bk"][0]
        v = xb @ p["wv"] + p["bv"][0]
        qh = q.reshape(S, HEADS, DH).transpose(1, 0, 2)
        kh = k.reshape(S, HEADS, DH).transpose(1, 0, 2)
        vh = v.reshape(S, HEADS, DH).transpose(1, 0, 2)
        sc = jnp.einsum("hqd,hkd->hqk", qh, kh) / jnp.sqrt(jnp.float32(DH))
        pr = jax.nn.softmax(sc, axis=-1)
        ctx = jnp.einsum("hqk,hkd->hqd", pr, vh).transpose(1, 0, 2).reshape(S, H)
        attn = ctx @ p["wo"] + p["bo"][0]
        x1 = _layer_norm(xb + attn, p["gamma"][0], p["beta"][0])
        hdn = jnp.maximum(x1 @ p["w1"] + p["b1"][0], 0.0)
        ffn = hdn @ p["w2"] + p["b2"][0]
        return _layer_norm(x1 + ffn, p["gamma"][0], p["beta"][0])
    return jax.vmap(one)(x)


def init_params(key):
    ks = jax.random.split(key, 8)
    std = 0.02
    return {
        "wq": jax.random.normal(ks[0], (H, H), jnp.float32) * std,
        "wk": jax.random.normal(ks[1], (H, H), jnp.float32) * std,
        "wv": jax.random.normal(ks[2], (H, H), jnp.float32) * std,
        "wo": jax.random.normal(ks[3], (H, H), jnp.float32) * std,
        "bq": jnp.zeros((1, H), jnp.float32),
        "bk": jnp.zeros((1, H), jnp.float32),
        "bv": jnp.zeros((1, H), jnp.float32),
        "bo": jnp.zeros((1, H), jnp.float32),
        "gamma": jnp.ones((1, H), jnp.float32),
        "beta": jnp.zeros((1, H), jnp.float32),
        "w1": jax.random.normal(ks[4], (H, F), jnp.float32) * std,
        "b1": jnp.zeros((1, F), jnp.float32),
        "w2": jax.random.normal(ks[5], (F, H), jnp.float32) * std,
        "b2": jnp.zeros((1, H), jnp.float32),
    }


if __name__ == "__main__":
    key = jax.random.PRNGKey(0)
    kx, kp = jax.random.split(key)
    x = jax.random.normal(kx, (B, S, H), jnp.float32)
    params = init_params(kp)

    out = encoder_layer(x, params)
    out = jax.block_until_ready(out)

    ref = encoder_layer_ref(x, params)
    assert out.shape == (B, S, H)
    assert jnp.all(jnp.isfinite(out))
    assert jnp.allclose(out, ref, atol=1e-4, rtol=1e-4)
    print("KERNEL_OK")
</pallas_src>

<mosaic_0001>
module attributes {stable_mosaic.version = 11 : i64} {
  func.func @encoder_layer_kernel(%arg0: i32, %arg1: memref<1x8x32xf32, #tpu.memory_space<vmem>>, %arg2: memref<32x96xf32, #tpu.memory_space<vmem>>, %arg3: memref<32x32xf32, #tpu.memory_space<vmem>>, %arg4: memref<32x64xf32, #tpu.memory_space<vmem>>, %arg5: memref<64x32xf32, #tpu.memory_space<vmem>>, %arg6: memref<6x96xf32, #tpu.memory_space<vmem>>, %arg7: memref<1x2x128xf32, #tpu.memory_space<vmem>>) attributes {dimension_semantics = [#tpu.dimension_semantics<parallel>], iteration_bounds = array<i64: 2>, scalar_prefetch = 0 : i64, scratch_operands = 0 : i64, tpu.core_type = #tpu.core_type<tc>, window_params = [{transform_indices = @transform_0, window_bounds = array<i64: 1, 8, 32>}, {pipeline_mode = #tpu.pipeline_mode<synchronous>, transform_indices = @transform_1, window_bounds = array<i64: 32, 96>}, {pipeline_mode = #tpu.pipeline_mode<synchronous>, transform_indices = @transform_2, window_bounds = array<i64: 32, 32>}, {pipeline_mode = #tpu.pipeline_mode<synchronous>, transform_indices = @transform_3, window_bounds = array<i64: 32, 64>}, {pipeline_mode = #tpu.pipeline_mode<synchronous>, transform_indices = @transform_4, window_bounds = array<i64: 64, 32>}, {pipeline_mode = #tpu.pipeline_mode<synchronous>, transform_indices = @transform_5, window_bounds = array<i64: 6, 96>}, {transform_indices = @transform_6, window_bounds = array<i64: 1, 2, 128>}]} {
    %c0 = arith.constant 0 : index
    %c0_0 = arith.constant 0 : index
    %c0_1 = arith.constant 0 : index
    %0 = vector.load %arg1[%c0, %c0_0, %c0_1] : memref<1x8x32xf32, #tpu.memory_space<vmem>>, vector<1x8x32xf32>
    %1 = vector.shape_cast %0 : vector<1x8x32xf32> to vector<8x32xf32>
    %c0_2 = arith.constant 0 : index
    %c0_3 = arith.constant 0 : index
    %2 = vector.load %arg6[%c0_2, %c0_3] : memref<6x96xf32, #tpu.memory_space<vmem>>, vector<6x96xf32>
    %3 = vector.extract_strided_slice %2 {offsets = [0, 0], sizes = [1, 96], strides = [1, 1]} : vector<6x96xf32> to vector<1x96xf32>
    %4 = vector.extract_strided_slice %2 {offsets = [1, 0], sizes = [1, 32], strides = [1, 1]} : vector<6x96xf32> to vector<1x32xf32>
    %5 = vector.extract_strided_slice %2 {offsets = [2, 0], sizes = [1, 32], strides = [1, 1]} : vector<6x96xf32> to vector<1x32xf32>
    %6 = vector.extract_strided_slice %2 {offsets = [3, 0], sizes = [1, 32], strides = [1, 1]} : vector<6x96xf32> to vector<1x32xf32>
    %7 = vector.extract_strided_slice %2 {offsets = [4, 0], sizes = [1, 64], strides = [1, 1]} : vector<6x96xf32> to vector<1x64xf32>
    %8 = vector.extract_strided_slice %2 {offsets = [5, 0], sizes = [1, 32], strides = [1, 1]} : vector<6x96xf32> to vector<1x32xf32>
    %c0_4 = arith.constant 0 : index
    %c0_5 = arith.constant 0 : index
    %9 = vector.load %arg2[%c0_4, %c0_5] : memref<32x96xf32, #tpu.memory_space<vmem>>, vector<32x96xf32>
    %cst = arith.constant dense<0.000000e+00> : vector<8x96xf32>
    %10 = tpu.matmul %1, %9, %cst {dimension_numbers = #tpu.dot_dimension_numbers<[1], [0], [0], [1], [0, 0, 1, 1], [], []>} : vector<8x32xf32>, vector<32x96xf32>, vector<8x96xf32> -> vector<8x96xf32>
    %11 = vector.broadcast %3 : vector<1x96xf32> to vector<8x96xf32>
    %12 = arith.addf %10, %11 : vector<8x96xf32>
    %cst_6 = arith.constant 0.000000e+00 : f32
    %13 = vector.broadcast %cst_6 : f32 to vector<8x32xf32>
    %14 = vector.extract_strided_slice %12 {offsets = [0, 0], sizes = [8, 8], strides = [1, 1]} : vector<8x96xf32> to vector<8x8xf32>
    %15 = vector.extract_strided_slice %12 {offsets = [0, 32], sizes = [8, 8], strides = [1, 1]} : vector<8x96xf32> to vector<8x8xf32>
    %16 = vector.extract_strided_slice %12 {offsets = [0, 64], sizes = [8, 8], strides = [1, 1]} : vector<8x96xf32> to vector<8x8xf32>
    %cst_7 = arith.constant dense<0.000000e+00> : vector<8x8xf32>
    %17 = tpu.matmul %14, %15, %cst_7 {dimension_numbers = #tpu.dot_dimension_numbers<[1], [1], [0], [0], [0, 0, 1, 0], [], []>} : vector<8x8xf32>, vector<8x8xf32>, vector<8x8xf32> -> vector<8x8xf32>
    %cst_8 = arith.constant 0.353553385 : f32
    %18 = vector.broadcast %cst_8 : f32 to vector<8x8xf32>
    %19 = arith.mulf %17, %18 : vector<8x8xf32>
    %cst_9 = arith.constant dense<0xFF800000> : vector<8xf32>
    %20 = vector.multi_reduction <maximumf>, %19, %cst_9 [1] : vector<8x8xf32> to vector<8xf32>
    %21 = vector.shape_cast %20 : vector<8xf32> to vector<8x1xf32>
    %22 = vector.broadcast %21 : vector<8x1xf32> to vector<8x8xf32>
    %23 = arith.subf %19, %22 : vector<8x8xf32>
    %24 = math.exp %23 : vector<8x8xf32>
    %cst_10 = arith.constant dense<0.000000e+00> : vector<8xf32>
    %25 = vector.multi_reduction <add>, %24, %cst_10 [1] : vector<8x8xf32> to vector<8xf32>
    %26 = vector.shape_cast %25 : vector<8xf32> to vector<8x1xf32>
    %27 = vector.broadcast %26 : vector<8x1xf32> to vector<8x8xf32>
    %28 = arith.divf %24, %27 : vector<8x8xf32>
    %cst_11 = arith.constant dense<0.000000e+00> : vector<8x8xf32>
    %29 = tpu.matmul %28, %16, %cst_11 {dimension_numbers = #tpu.dot_dimension_numbers<[1], [0], [0], [1], [0, 0, 1, 1], [], []>} : vector<8x8xf32>, vector<8x8xf32>, vector<8x8xf32> -> vector<8x8xf32>
    %c0_12 = arith.constant 0 : index
    %c0_13 = arith.constant 0 : index
    %30 = vector.load %arg3[%c0_12, %c0_13] : memref<32x32xf32, #tpu.memory_space<vmem>>, vector<8x32xf32>
    %cst_14 = arith.constant dense<0.000000e+00> : vector<8x32xf32>
    %31 = tpu.matmul %29, %30, %cst_14 {dimension_numbers = #tpu.dot_dimension_numbers<[1], [0], [0], [1], [0, 0, 1, 1], [], []>} : vector<8x8xf32>, vector<8x32xf32>, vector<8x32xf32> -> vector<8x32xf32>
    %32 = arith.addf %13, %31 : vector<8x32xf32>
    %33 = vector.extract_strided_slice %12 {offsets = [0, 8], sizes = [8, 8], strides = [1, 1]} : vector<8x96xf32> to vector<8x8xf32>
    %34 = vector.extract_strided_slice %12 {offsets = [0, 40], sizes = [8, 8], strides = [1, 1]} : vector<8x96xf32> to vector<8x8xf32>
    %35 = vector.extract_strided_slice %12 {offsets = [0, 72], sizes = [8, 8], strides = [1, 1]} : vector<8x96xf32> to vector<8x8xf32>
    %cst_15 = arith.constant dense<0.000000e+00> : vector<8x8xf32>
    %36 = tpu.matmul %33, %34, %cst_15 {dimension_numbers = #tpu.dot_dimension_numbers<[1], [1], [0], [0], [0, 0, 1, 0], [], []>} : vector<8x8xf32>, vector<8x8xf32>, vector<8x8xf32> -> vector<8x8xf32>
    %cst_16 = arith.constant 0.353553385 : f32
    %37 = vector.broadcast %cst_16 : f32 to vector<8x8xf32>
    %38 = arith.mulf %36, %37 : vector<8x8xf32>
    %cst_17 = arith.constant dense<0xFF800000> : vector<8xf32>
    %39 = vector.multi_reduction <maximumf>, %38, %cst_17 [1] : vector<8x8xf32> to vector<8xf32>
    %40 = vector.shape_cast %39 : vector<8xf32> to vector<8x1xf32>
    %41 = vector.broadcast %40 : vector<8x1xf32> to vector<8x8xf32>
    %42 = arith.subf %38, %41 : vector<8x8xf32>
    %43 = math.exp %42 : vector<8x8xf32>
    %cst_18 = arith.constant dense<0.000000e+00> : vector<8xf32>
    %44 = vector.multi_reduction <add>, %43, %cst_18 [1] : vector<8x8xf32> to vector<8xf32>
    %45 = vector.shape_cast %44 : vector<8xf32> to vector<8x1xf32>
    %46 = vector.broadcast %45 : vector<8x1xf32> to vector<8x8xf32>
    %47 = arith.divf %43, %46 : vector<8x8xf32>
    %cst_19 = arith.constant dense<0.000000e+00> : vector<8x8xf32>
    %48 = tpu.matmul %47, %35, %cst_19 {dimension_numbers = #tpu.dot_dimension_numbers<[1], [0], [0], [1], [0, 0, 1, 1], [], []>} : vector<8x8xf32>, vector<8x8xf32>, vector<8x8xf32> -> vector<8x8xf32>
    %c8 = arith.constant 8 : index
    %c0_20 = arith.constant 0 : index
    %49 = vector.load %arg3[%c8, %c0_20] : memref<32x32xf32, #tpu.memory_space<vmem>>, vector<8x32xf32>
    %cst_21 = arith.constant dense<0.000000e+00> : vector<8x32xf32>
    %50 = tpu.matmul %48, %49, %cst_21 {dimension_numbers = #tpu.dot_dimension_numbers<[1], [0], [0], [1], [0, 0, 1, 1], [], []>} : vector<8x8xf32>, vector<8x32xf32>, vector<8x32xf32> -> vector<8x32xf32>
    %51 = arith.addf %32, %50 : vector<8x32xf32>
    %52 = vector.extract_strided_slice %12 {offsets = [0, 16], sizes = [8, 8], strides = [1, 1]} : vector<8x96xf32> to vector<8x8xf32>
    %53 = vector.extract_strided_slice %12 {offsets = [0, 48], sizes = [8, 8], strides = [1, 1]} : vector<8x96xf32> to vector<8x8xf32>
    %54 = vector.extract_strided_slice %12 {offsets = [0, 80], sizes = [8, 8], strides = [1, 1]} : vector<8x96xf32> to vector<8x8xf32>
    %cst_22 = arith.constant dense<0.000000e+00> : vector<8x8xf32>
    %55 = tpu.matmul %52, %53, %cst_22 {dimension_numbers = #tpu.dot_dimension_numbers<[1], [1], [0], [0], [0, 0, 1, 0], [], []>} : vector<8x8xf32>, vector<8x8xf32>, vector<8x8xf32> -> vector<8x8xf32>
    %cst_23 = arith.constant 0.353553385 : f32
    %56 = vector.broadcast %cst_23 : f32 to vector<8x8xf32>
    %57 = arith.mulf %55, %56 : vector<8x8xf32>
    %cst_24 = arith.constant dense<0xFF800000> : vector<8xf32>
    %58 = vector.multi_reduction <maximumf>, %57, %cst_24 [1] : vector<8x8xf32> to vector<8xf32>
    %59 = vector.shape_cast %58 : vector<8xf32> to vector<8x1xf32>
    %60 = vector.broadcast %59 : vector<8x1xf32> to vector<8x8xf32>
    %61 = arith.subf %57, %60 : vector<8x8xf32>
    %62 = math.exp %61 : vector<8x8xf32>
    %cst_25 = arith.constant dense<0.000000e+00> : vector<8xf32>
    %63 = vector.multi_reduction <add>, %62, %cst_25 [1] : vector<8x8xf32> to vector<8xf32>
    %64 = vector.shape_cast %63 : vector<8xf32> to vector<8x1xf32>
    %65 = vector.broadcast %64 : vector<8x1xf32> to vector<8x8xf32>
    %66 = arith.divf %62, %65 : vector<8x8xf32>
    %cst_26 = arith.constant dense<0.000000e+00> : vector<8x8xf32>
    %67 = tpu.matmul %66, %54, %cst_26 {dimension_numbers = #tpu.dot_dimension_numbers<[1], [0], [0], [1], [0, 0, 1, 1], [], []>} : vector<8x8xf32>, vector<8x8xf32>, vector<8x8xf32> -> vector<8x8xf32>
    %c16 = arith.constant 16 : index
    %c0_27 = arith.constant 0 : index
    %68 = vector.load %arg3[%c16, %c0_27] : memref<32x32xf32, #tpu.memory_space<vmem>>, vector<8x32xf32>
    %cst_28 = arith.constant dense<0.000000e+00> : vector<8x32xf32>
    %69 = tpu.matmul %67, %68, %cst_28 {dimension_numbers = #tpu.dot_dimension_numbers<[1], [0], [0], [1], [0, 0, 1, 1], [], []>} : vector<8x8xf32>, vector<8x32xf32>, vector<8x32xf32> -> vector<8x32xf32>
    %70 = arith.addf %51, %69 : vector<8x32xf32>
    %71 = vector.extract_strided_slice %12 {offsets = [0, 24], sizes = [8, 8], strides = [1, 1]} : vector<8x96xf32> to vector<8x8xf32>
    %72 = vector.extract_strided_slice %12 {offsets = [0, 56], sizes = [8, 8], strides = [1, 1]} : vector<8x96xf32> to vector<8x8xf32>
    %73 = vector.extract_strided_slice %12 {offsets = [0, 88], sizes = [8, 8], strides = [1, 1]} : vector<8x96xf32> to vector<8x8xf32>
    %cst_29 = arith.constant dense<0.000000e+00> : vector<8x8xf32>
    %74 = tpu.matmul %71, %72, %cst_29 {dimension_numbers = #tpu.dot_dimension_numbers<[1], [1], [0], [0], [0, 0, 1, 0], [], []>} : vector<8x8xf32>, vector<8x8xf32>, vector<8x8xf32> -> vector<8x8xf32>
    %cst_30 = arith.constant 0.353553385 : f32
    %75 = vector.broadcast %cst_30 : f32 to vector<8x8xf32>
    %76 = arith.mulf %74, %75 : vector<8x8xf32>
    %cst_31 = arith.constant dense<0xFF800000> : vector<8xf32>
    %77 = vector.multi_reduction <maximumf>, %76, %cst_31 [1] : vector<8x8xf32> to vector<8xf32>
    %78 = vector.shape_cast %77 : vector<8xf32> to vector<8x1xf32>
    %79 = vector.broadcast %78 : vector<8x1xf32> to vector<8x8xf32>
    %80 = arith.subf %76, %79 : vector<8x8xf32>
    %81 = math.exp %80 : vector<8x8xf32>
    %cst_32 = arith.constant dense<0.000000e+00> : vector<8xf32>
    %82 = vector.multi_reduction <add>, %81, %cst_32 [1] : vector<8x8xf32> to vector<8xf32>
    %83 = vector.shape_cast %82 : vector<8xf32> to vector<8x1xf32>
    %84 = vector.broadcast %83 : vector<8x1xf32> to vector<8x8xf32>
    %85 = arith.divf %81, %84 : vector<8x8xf32>
    %cst_33 = arith.constant dense<0.000000e+00> : vector<8x8xf32>
    %86 = tpu.matmul %85, %73, %cst_33 {dimension_numbers = #tpu.dot_dimension_numbers<[1], [0], [0], [1], [0, 0, 1, 1], [], []>} : vector<8x8xf32>, vector<8x8xf32>, vector<8x8xf32> -> vector<8x8xf32>
    %c24 = arith.constant 24 : index
    %c0_34 = arith.constant 0 : index
    %87 = vector.load %arg3[%c24, %c0_34] : memref<32x32xf32, #tpu.memory_space<vmem>>, vector<8x32xf32>
    %cst_35 = arith.constant dense<0.000000e+00> : vector<8x32xf32>
    %88 = tpu.matmul %86, %87, %cst_35 {dimension_numbers = #tpu.dot_dimension_numbers<[1], [0], [0], [1], [0, 0, 1, 1], [], []>} : vector<8x8xf32>, vector<8x32xf32>, vector<8x32xf32> -> vector<8x32xf32>
    %89 = arith.addf %70, %88 : vector<8x32xf32>
    %90 = vector.broadcast %4 : vector<1x32xf32> to vector<8x32xf32>
    %91 = arith.addf %89, %90 : vector<8x32xf32>
    %92 = arith.addf %1, %91 : vector<8x32xf32>
    %cst_36 = arith.constant dense<0.000000e+00> : vector<8xf32>
    %93 = vector.multi_reduction <add>, %92, %cst_36 [1] : vector<8x32xf32> to vector<8xf32>
    %94 = vector.shape_cast %93 : vector<8xf32> to vector<8x1xf32>
    %cst_37 = arith.constant 3.200000e+01 : f32
    %95 = vector.broadcast %cst_37 : f32 to vector<8x1xf32>
    %96 = arith.divf %94, %95 : vector<8x1xf32>
    %97 = vector.broadcast %96 : vector<8x1xf32> to vector<8x32xf32>
    %98 = arith.subf %92, %97 : vector<8x32xf32>
    %99 = arith.mulf %98, %98 : vector<8x32xf32>
    %cst_38 = arith.constant dense<0.000000e+00> : vector<8xf32>
    %100 = vector.multi_reduction <add>, %99, %cst_38 [1] : vector<8x32xf32> to vector<8xf32>
    %101 = vector.shape_cast %100 : vector<8xf32> to vector<8x1xf32>
    %cst_39 = arith.constant 3.200000e+01 : f32
    %102 = vector.broadcast %cst_39 : f32 to vector<8x1xf32>
    %103 = arith.divf %101, %102 : vector<8x1xf32>
    %104 = vector.broadcast %96 : vector<8x1xf32> to vector<8x32xf32>
    %105 = arith.subf %92, %104 : vector<8x32xf32>
    %cst_40 = arith.constant 9.99999974E-6 : f32
    %106 = vector.broadcast %cst_40 : f32 to vector<8x1xf32>
    %107 = arith.addf %103, %106 : vector<8x1xf32>
    %108 = math.rsqrt %107 : vector<8x1xf32>
    %109 = vector.broadcast %108 : vector<8x1xf32> to vector<8x32xf32>
    %110 = arith.mulf %105, %109 : vector<8x32xf32>
    %111 = vector.broadcast %5 : vector<1x32xf32> to vector<8x32xf32>
    %112 = arith.mulf %110, %111 : vector<8x32xf32>
    %113 = vector.broadcast %6 : vector<1x32xf32> to vector<8x32xf32>
    %114 = arith.addf %112, %113 : vector<8x32xf32>
    %c0_41 = arith.constant 0 : index
    %c0_42 = arith.constant 0 : index
    %115 = vector.load %arg4[%c0_41, %c0_42] : memref<32x64xf32, #tpu.memory_space<vmem>>, vector<32x64xf32>
    %cst_43 = arith.constant dense<0.000000e+00> : vector<8x64xf32>
    %116 = tpu.matmul %114, %115, %cst_43 {dimension_numbers = #tpu.dot_dimension_numbers<[1], [0], [0], [1], [0, 0, 1, 1], [], []>} : vector<8x32xf32>, vector<32x64xf32>, vector<8x64xf32> -> vector<8x64xf32>
    %117 = vector.broadcast %7 : vector<1x64xf32> to vector<8x64xf32>
    %118 = arith.addf %116, %117 : vector<8x64xf32>
    %cst_44 = arith.constant 0.000000e+00 : f32
    %119 = vector.broadcast %cst_44 : f32 to vector<8x64xf32>
    %120 = arith.maximumf %118, %119 : vector<8x64xf32>
    %c0_45 = arith.constant 0 : index
    %c0_46 = arith.constant 0 : index
    %121 = vector.load %arg5[%c0_45, %c0_46] : memref<64x32xf32, #tpu.memory_space<vmem>>, vector<64x32xf32>
    %cst_47 = arith.constant dense<0.000000e+00> : vector<8x32xf32>
    %122 = tpu.matmul %120, %121, %cst_47 {dimension_numbers = #tpu.dot_dimension_numbers<[1], [0], [0], [1], [0, 0, 1, 1], [], []>} : vector<8x64xf32>, vector<64x32xf32>, vector<8x32xf32> -> vector<8x32xf32>
    %123 = vector.broadcast %8 : vector<1x32xf32> to vector<8x32xf32>
    %124 = arith.addf %122, %123 : vector<8x32xf32>
    %125 = arith.addf %114, %124 : vector<8x32xf32>
    %cst_48 = arith.constant dense<0.000000e+00> : vector<8xf32>
    %126 = vector.multi_reduction <add>, %125, %cst_48 [1] : vector<8x32xf32> to vector<8xf32>
    %127 = vector.shape_cast %126 : vector<8xf32> to vector<8x1xf32>
    %cst_49 = arith.constant 3.200000e+01 : f32
    %128 = vector.broadcast %cst_49 : f32 to vector<8x1xf32>
    %129 = arith.divf %127, %128 : vector<8x1xf32>
    %130 = vector.broadcast %129 : vector<8x1xf32> to vector<8x32xf32>
    %131 = arith.subf %125, %130 : vector<8x32xf32>
    %132 = arith.mulf %131, %131 : vector<8x32xf32>
    %cst_50 = arith.constant dense<0.000000e+00> : vector<8xf32>
    %133 = vector.multi_reduction <add>, %132, %cst_50 [1] : vector<8x32xf32> to vector<8xf32>
    %134 = vector.shape_cast %133 : vector<8xf32> to vector<8x1xf32>
    %cst_51 = arith.constant 3.200000e+01 : f32
    %135 = vector.broadcast %cst_51 : f32 to vector<8x1xf32>
    %136 = arith.divf %134, %135 : vector<8x1xf32>
    %137 = vector.broadcast %129 : vector<8x1xf32> to vector<8x32xf32>
    %138 = arith.subf %125, %137 : vector<8x32xf32>
    %cst_52 = arith.constant 9.99999974E-6 : f32
    %139 = vector.broadcast %cst_52 : f32 to vector<8x1xf32>
    %140 = arith.addf %136, %139 : vector<8x1xf32>
    %141 = math.rsqrt %140 : vector<8x1xf32>
    %142 = vector.broadcast %141 : vector<8x1xf32> to vector<8x32xf32>
    %143 = arith.mulf %138, %142 : vector<8x32xf32>
    %144 = vector.broadcast %5 : vector<1x32xf32> to vector<8x32xf32>
    %145 = arith.mulf %143, %144 : vector<8x32xf32>
    %146 = vector.broadcast %6 : vector<1x32xf32> to vector<8x32xf32>
    %147 = arith.addf %145, %146 : vector<8x32xf32>
    %148 = vector.extract_strided_slice %147 {offsets = [0, 0], sizes = [1, 32], strides = [1, 1]} : vector<8x32xf32> to vector<1x32xf32>
    %149 = vector.extract_strided_slice %147 {offsets = [1, 0], sizes = [1, 32], strides = [1, 1]} : vector<8x32xf32> to vector<1x32xf32>
    %150 = vector.extract_strided_slice %147 {offsets = [2, 0], sizes = [1, 32], strides = [1, 1]} : vector<8x32xf32> to vector<1x32xf32>
    %151 = vector.extract_strided_slice %147 {offsets = [3, 0], sizes = [1, 32], strides = [1, 1]} : vector<8x32xf32> to vector<1x32xf32>
    %152 = tpu.concatenate %148, %149, %150, %151 in 1 : vector<1x32xf32>, vector<1x32xf32>, vector<1x32xf32>, vector<1x32xf32> -> vector<1x128xf32>
    %153 = vector.extract_strided_slice %147 {offsets = [4, 0], sizes = [1, 32], strides = [1, 1]} : vector<8x32xf32> to vector<1x32xf32>
    %154 = vector.extract_strided_slice %147 {offsets = [5, 0], sizes = [1, 32], strides = [1, 1]} : vector<8x32xf32> to vector<1x32xf32>
    %155 = vector.extract_strided_slice %147 {offsets = [6, 0], sizes = [1, 32], strides = [1, 1]} : vector<8x32xf32> to vector<1x32xf32>
    %156 = vector.extract_strided_slice %147 {offsets = [7, 0], sizes = [1, 32], strides = [1, 1]} : vector<8x32xf32> to vector<1x32xf32>
    %157 = tpu.concatenate %153, %154, %155, %156 in 1 : vector<1x32xf32>, vector<1x32xf32>, vector<1x32xf32>, vector<1x32xf32> -> vector<1x128xf32>
    %158 = tpu.concatenate %152, %157 in 0 : vector<1x128xf32>, vector<1x128xf32> -> vector<2x128xf32>
    %c0_53 = arith.constant 0 : index
    %c0_54 = arith.constant 0 : index
    %c0_55 = arith.constant 0 : index
    %159 = vector.load %arg7[%c0_53, %c0_54, %c0_55] : memref<1x2x128xf32, #tpu.memory_space<vmem>>, vector<1x2x128xf32>
    %160 = vector.shape_cast %159 : vector<1x2x128xf32> to vector<2x128xf32>
    %161 = vector.shape_cast %158 : vector<2x128xf32> to vector<1x2x128xf32>
    tpu.vector_store %arg7[%c0_53, %c0_54, %c0_55], %161 {strides = array<i32>} : memref<1x2x128xf32, #tpu.memory_space<vmem>>, vector<1x2x128xf32>,
    return
  }
  func.func @transform_0(%arg0: i32) -> (i32, i32, i32) {
    %c0_i32 = arith.constant 0 : i32
    %c0_i32_0 = arith.constant 0 : i32
    %c0_i32_1 = arith.constant 0 : i32
    return %arg0, %c0_i32, %c0_i32_0 : i32, i32, i32
  }
  func.func @transform_1(%arg0: i32) -> (i32, i32) {
    %c0_i32 = arith.constant 0 : i32
    %c0_i32_0 = arith.constant 0 : i32
    %c0_i32_1 = arith.constant 0 : i32
    return %c0_i32, %c0_i32_0 : i32, i32
  }
  func.func @transform_2(%arg0: i32) -> (i32, i32) {
    %c0_i32 = arith.constant 0 : i32
    %c0_i32_0 = arith.constant 0 : i32
    %c0_i32_1 = arith.constant 0 : i32
    return %c0_i32, %c0_i32_0 : i32, i32
  }
  func.func @transform_3(%arg0: i32) -> (i32, i32) {
    %c0_i32 = arith.constant 0 : i32
    %c0_i32_0 = arith.constant 0 : i32
    %c0_i32_1 = arith.constant 0 : i32
    return %c0_i32, %c0_i32_0 : i32, i32
  }
  func.func @transform_4(%arg0: i32) -> (i32, i32) {
    %c0_i32 = arith.constant 0 : i32
    %c0_i32_0 = arith.constant 0 : i32
    %c0_i32_1 = arith.constant 0 : i32
    return %c0_i32, %c0_i32_0 : i32, i32
  }
  func.func @transform_5(%arg0: i32) -> (i32, i32) {
    %c0_i32 = arith.constant 0 : i32
    %c0_i32_0 = arith.constant 0 : i32
    %c0_i32_1 = arith.constant 0 : i32
    return %c0_i32, %c0_i32_0 : i32, i32
  }
  func.func @transform_6(%arg0: i32) -> (i32, i32, i32) {
    %c0_i32 = arith.constant 0 : i32
    %c0_i32_0 = arith.constant 0 : i32
    %c0_i32_1 = arith.constant 0 : i32
    return %arg0, %c0_i32, %c0_i32_0 : i32, i32, i32
  }
}

</mosaic_0001>

<llo_original>
// kernel: tpu_custom_call.1
$region0: #{tpu_custom_call.1}
  #allocation0 [shape = 'u32[]', space=smem, size = 0x4, offset = 0x4, fixed_abs, tag = 'smem constant byte address 0x4 - core index']
  #allocation1 [shape = 'u32[144,128]{1,0:T(1,128)}', space=vmem, size = 0x12000, scoped, tag = 'internal scratch']
  %s0 = inlined_call_operand.hbm [shape: f32[2,8,32], index: 0, kind: input, shape index: {}]
  %s1 = inlined_call_operand.vmem [shape: f32[32,96], index: 1, kind: input, shape index: {}]
  %s2 = inlined_call_operand.vmem [shape: f32[32,32], index: 2, kind: input, shape index: {}]
  %s3 = inlined_call_operand.vmem [shape: f32[32,64], index: 3, kind: input, shape index: {}]
  %s4 = inlined_call_operand.vmem [shape: f32[64,32], index: 4, kind: input, shape index: {}]
  %s5 = inlined_call_operand.vmem [shape: f32[6,96], index: 5, kind: input, shape index: {}]
  %s6 = inlined_call_operand.hbm [shape: f32[2,2,128], index: 6, kind: output, shape index: {}]
  %s7 = sld [smem:[#allocation0]]
  $region61: #{tpu_custom_call.1} parent=0
    _
  %s9 = ssub.s32 1, %s7
  %s10 = scalar_select 0, %s9, %s7
  $region1: #{tpu_custom_call.1} parent=0
    #allocation2 [shape = 'u8[8192]{0}', space=vmem, size = 0x2000, scoped, tag = 'input window, operand 0']
    #allocation3 [shape = 's32[2]{0}', space=sflag, size = 0x8, scoped, tag = 'scoped memory for tpu_custom_call.1']
    #allocation4 [shape = 's32[2]{0}', space=sflag, size = 0x8, scoped, tag = 'scoped memory for tpu_custom_call.1']
    #allocation5 [shape = 'u8[2048]{0}', space=vmem, size = 0x800, scoped, tag = 'output window, operand 0']
    %11 = vsyncpa [#allocation3], 0
    %s12 = scalar_lea.sflag [#allocation3], 1
    %13 = vsyncpa %s12, 0
    %14 = vsyncpa [#allocation4], 0
    %s15 = scalar_lea.sflag [#allocation4], 1
    %16 = vsyncpa %s15, 0
    loop: start=0, step=1, limit=4
    $region2: #{tpu_custom_call.1} parent=1 // loop_pre_header
      _
    $region3: #{tpu_custom_call.1} parent=1 // loop_header
      %s18 = sphi 0, %s22
      %p19 = scmp.ge.s32.totalorder %s18, 4
      %s28 = sphi 0, %s30
      %s31 = sphi 0, %s28
      %s32 = sphi 0, %s31
      %s48 = sphi 0, %s32
      %s52 = sphi 0, %s52
      %s54 = sphi 0, %s52
      %s55 = sphi 0, %s54
      %s69 = sphi 0, %s55
      %s73 = sphi 0, %s73
      %s75 = sphi 0, %s73
      %s76 = sphi 0, %s75
      %s90 = sphi 0, %s76
      %s94 = sphi 0, %s94
      %s96 = sphi 0, %s94
      %s97 = sphi 0, %s96
      %s111 = sphi 0, %s97
      %s115 = sphi 0, %s115
      %s117 = sphi 0, %s115
      %s118 = sphi 0, %s117
      %s132 = sphi 0, %s118
      %s136 = sphi 0, %s136
      %s138 = sphi 0, %s136
      %s139 = sphi 0, %s138
      %s153 = sphi 0, %s139
      %s159 = sphi 0, %s161
      %s162 = sphi 0, %s159
      %s163 = sphi 0, %s162
      %s179 = sphi 0, %s163
    $region4: #{tpu_custom_call.1} parent=1 // loop_header_branch
      %21 = sbr.rel (%p19) target = $region8
    $region5: #{tpu_custom_call.1} parent=1 // loop_body
      %s23 = ssub.s32 %s18, 1
      %s24 = ssub.s32 %s18, 2
      %s25 = sadd.s32 %s18, 1
      %s26 = ssub.s32 %s18, %s25
      %p27 = scmp.eq.s32.totalorder %s26, 0
      %s29 = sadd.s32 %s28, 1
      %s30 = scalar_select %p27, %s28, %s29
      %p33 = pneg %p27
      %p34 = scmp.eq.s32.totalorder %s18, 1
      %p35 = por %p33, %p34
      %p36 = scmp.ne.s32.totalorder %s28, %s31
      %p37 = scmp.eq.s32.totalorder %s18, 0
      %p38 = por %p36, %p37
      %p39 = scmp.ne.s32.totalorder %s28, %s31
      %p40 = scmp.eq.s32.totalorder %s23, 1
      %p41 = por %p39, %p40
      %p42 = scmp.ne.s32.totalorder %s31, %s32
      %p43 = scmp.eq.s32.totalorder %s23, 0
      %p44 = por %p42, %p43
      %p45 = scmp.ne.s32.totalorder %s31, %s32
      %p46 = scmp.eq.s32.totalorder %s24, 1
      %p47 = por %p45, %p46
      %p49 = scmp.ne.s32.totalorder %s32, %s48
      %p50 = scmp.eq.s32.totalorder %s24, 0
      %p51 = por %p49, %p50
      %s53 = sadd.s32 %s52, 1
      %p56 = scmp.eq.s32.totalorder %s18, 1
      %p57 = scmp.ne.s32.totalorder %s52, %s54
      %p58 = scmp.eq.s32.totalorder %s18, 0
      %p59 = por %p57, %p58
      %p60 = scmp.ne.s32.totalorder %s52, %s54
      %p61 = scmp.eq.s32.totalorder %s23, 1
      %p62 = por %p60, %p61
      %p63 = scmp.ne.s32.totalorder %s54, %s55
      %p64 = scmp.eq.s32.totalorder %s23, 0
      %p65 = por %p63, %p64
      %p66 = scmp.ne.s32.totalorder %s54, %s55
      %p67 = scmp.eq.s32.totalorder %s24, 1
      %p68 = por %p66, %p67
      %p70 = scmp.ne.s32.totalorder %s55, %s69
      %p71 = scmp.eq.s32.totalorder %s24, 0
      %p72 = por %p70, %p71
      %s74 = sadd.s32 %s73, 1
      %p77 = scmp.eq.s32.totalorder %s18, 1
      %p78 = scmp.ne.s32.totalorder %s73, %s75
      %p79 = scmp.eq.s32.totalorder %s18, 0
      %p80 = por %p78, %p79
      %p81 = scmp.ne.s32.totalorder %s73, %s75
      %p82 = scmp.eq.s32.totalorder %s23, 1
      %p83 = por %p81, %p82
      %p84 = scmp.ne.s32.totalorder %s75, %s76
      %p85 = scmp.eq.s32.totalorder %s23, 0
      %p86 = por %p84, %p85
      %p87 = scmp.ne.s32.totalorder %s75, %s76
      %p88 = scmp.eq.s32.totalorder %s24, 1
      %p89 = por %p87, %p88
      %p91 = scmp.ne.s32.totalorder %s76, %s90
      %p92 = scmp.eq.s32.totalorder %s24, 0
      %p93 = por %p91, %p92
      %s95 = sadd.s32 %s94, 1
      %p98 = scmp.eq.s32.totalorder %s18, 1
      %p99 = scmp.ne.s32.totalorder %s94, %s96
      %p100 = scmp.eq.s32.totalorder %s18, 0
      %p101 = por %p99, %p100
      %p102 = scmp.ne.s32.totalorder %s94, %s96
      %p103 = scmp.eq.s32.totalorder %s23, 1
      %p104 = por %p102, %p103
      %p105 = scmp.ne.s32.totalorder %s96, %s97
      %p106 = scmp.eq.s32.totalorder %s23, 0
      %p107 = por %p105, %p106
      %p108 = scmp.ne.s32.totalorder %s96, %s97
      %p109 = scmp.eq.s32.totalorder %s24, 1
      %p110 = por %p108, %p109
      %p112 = scmp.ne.s32.totalorder %s97, %s111
      %p113 = scmp.eq.s32.totalorder %s24, 0
      %p114 = por %p112, %p113
      %s116 = sadd.s32 %s115, 1
      %p119 = scmp.eq.s32.totalorder %s18, 1
      %p120 = scmp.ne.s32.totalorder %s115, %s117
      %p121 = scmp.eq.s32.totalorder %s18, 0
      %p122 = por %p120, %p121
      %p123 = scmp.ne.s32.totalorder %s115, %s117
      %p124 = scmp.eq.s32.totalorder %s23, 1
      %p125 = por %p123, %p124
      %p126 = scmp.ne.s32.totalorder %s117, %s118
      %p127 = scmp.eq.s32.totalorder %s23, 0
      %p128 = por %p126, %p127
      %p129 = scmp.ne.s32.totalorder %s117, %s118
      %p130 = scmp.eq.s32.totalorder %s24, 1
      %p131 = por %p129, %p130
      %p133 = scmp.ne.s32.totalorder %s118, %s132
      %p134 = scmp.eq.s32.totalorder %s24, 0
      %p135 = por %p133, %p134
      %s137 = sadd.s32 %s136, 1
      %p140 = scmp.eq.s32.totalorder %s18, 1
      %p141 = scmp.ne.s32.totalorder %s136, %s138
      %p142 = scmp.eq.s32.totalorder %s18, 0
      %p143 = por %p141, %p142
      %p144 = scmp.ne.s32.totalorder %s136, %s138
      %p145 = scmp.eq.s32.totalorder %s23, 1
      %p146 = por %p144, %p145
      %p147 = scmp.ne.s32.totalorder %s138, %s139
      %p148 = scmp.eq.s32.totalorder %s23, 0
      %p149 = por %p147, %p148
      %p150 = scmp.ne.s32.totalorder %s138, %s139
      %p151 = scmp.eq.s32.totalorder %s24, 1
      %p152 = por %p150, %p151
      %p154 = scmp.ne.s32.totalorder %s139, %s153
      %p155 = scmp.eq.s32.totalorder %s24, 0
      %p156 = por %p154, %p155
      %s157 = ssub.s32 %s18, %s25
      %p158 = scmp.eq.s32.totalorder %s157, 0
      %s160 = sadd.s32 %s159, 1
      %s161 = scalar_select %p158, %s159, %s160
      %p164 = pneg %p158
      %p165 = scmp.eq.s32.totalorder %s18, 1
      %p166 = por %p164, %p165
      %p167 = scmp.ne.s32.totalorder %s159, %s162
      %p168 = scmp.eq.s32.totalorder %s18, 0
      %p169 = por %p167, %p168
      %p170 = scmp.ne.s32.totalorder %s159, %s162
      %p171 = scmp.eq.s32.totalorder %s23, 1
      %p172 = por %p170, %p171
      %p173 = scmp.ne.s32.totalorder %s162, %s163
      %p174 = scmp.eq.s32.totalorder %s23, 0
      %p175 = por %p173, %p174
      %p176 = scmp.ne.s32.totalorder %s162, %s163
      %p177 = scmp.eq.s32.totalorder %s24, 1
      %p178 = por %p176, %p177
      %p180 = scmp.ne.s32.totalorder %s163, %s179
      %p181 = scmp.eq.s32.totalorder %s24, 0
      %p182 = por %p180, %p181
      %p183 = scmp.le.s32.totalorder 1, %s18
      %p184 = scmp.lt.s32.totalorder %s18, 3
      %p185 = pnand %p183, %p184
      %p186 = pneg %p185
      // Predicated region
      $region9: #{tpu_custom_call.1} parent=5 // pred_check
        _
      $region10: #{tpu_custom_call.1} parent=5 // pred_check_branch
        %188 = sbr.rel (%p185) target = $region12
      $region11: #{tpu_custom_call.1} parent=5 // pred_region
        %s189 = ssub.s32 %s18, 1
        // Predicated region
        $region13: #{tpu_custom_call.1} parent=11 // pred_check
          %p190 = pneg %p65
        $region14: #{tpu_custom_call.1} parent=11 // pred_check_branch
          %192 = sbr.rel (%p190) target = $region16
        $region15: #{tpu_custom_call.1} parent=11 // pred_region
          _
        $region16: #{tpu_custom_call.1} parent=11 // pred_fallthru
          _
        // Predicated region
        $region17: #{tpu_custom_call.1} parent=11 // pred_check
          %p193 = pneg %p86
        $region18: #{tpu_custom_call.1} parent=11 // pred_check_branch
          %195 = sbr.rel (%p193) target = $region20
        $region19: #{tpu_custom_call.1} parent=11 // pred_region
          _
        $region20: #{tpu_custom_call.1} parent=11 // pred_fallthru
          _
        // Predicated region
        $region21: #{tpu_custom_call.1} parent=11 // pred_check
          %p196 = pneg %p107
        $region22: #{tpu_custom_call.1} parent=11 // pred_check_branch
          %198 = sbr.rel (%p196) target = $region24
        $region23: #{tpu_custom_call.1} parent=11 // pred_region
          _
        $region24: #{tpu_custom_call.1} parent=11 // pred_fallthru
          _
        // Predicated region
        $region25: #{tpu_custom_call.1} parent=11 // pred_check
          %p199 = pneg %p128
        $region26: #{tpu_custom_call.1} parent=11 // pred_check_branch
          %201 = sbr.rel (%p199) target = $region28
        $region27: #{tpu_custom_call.1} parent=11 // pred_region
          _
        $region28: #{tpu_custom_call.1} parent=11 // pred_fallthru
          _
        // Predicated region
        $region29: #{tpu_custom_call.1} parent=11 // pred_check
          %p202 = pneg %p149
        $region30: #{tpu_custom_call.1} parent=11 // pred_check_branch
          %204 = sbr.rel (%p202) target = $region32
        $region31: #{tpu_custom_call.1} parent=11 // pred_region
          _
        $region32: #{tpu_custom_call.1} parent=11 // pred_fallthru
          _
      $region12: #{tpu_custom_call.1} parent=5 // pred_fallthru
        _
      %p205 = scmp.lt.s32.totalorder %s18, 2
      // Predicated region
      $region33: #{tpu_custom_call.1} parent=5 // pred_check
        %p206 = pneg %p205
      $region34: #{tpu_custom_call.1} parent=5 // pred_check_branch
        %208 = sbr.rel (%p206) target = $region36
      $region35: #{tpu_custom_call.1} parent=5 // pred_region
        // Predicated region
        $region37: #{tpu_custom_call.1} parent=35 // pred_check
          %p209 = pneg %p38
        $region38: #{tpu_custom_call.1} parent=35 // pred_check_branch
          %211 = sbr.rel (%p209) target = $region40
        $region39: #{tpu_custom_call.1} parent=35 // pred_region
          %s212 = sand.u32 %s28, 1
          %s213 = scalar_lea.sflag [#allocation3], %s212
          %s214 = sand.u32 %s28, 1
          %s215 = smul.addr %s214, 8
          %s216 = scalar_lea.vmem [#allocation2], %s215
          %s218 = ssub.s32 128, 128
          %219 = vsyncadd %s213, %s218
          %s220 = smul.addr %s18, 128
          %s221 = scalar_lea.hbm %s0, %s220
          %s223 = sshll.u32 %s216, 4
          %s224 = int_to_ptr.vmem [resolvable:$true] %s223
          %226 = dma.hbm_to_vmem [thread:$0]  %s221, 128, %s224, %s213
        $region40: #{tpu_custom_call.1} parent=35 // pred_fallthru
          _
      $region36: #{tpu_custom_call.1} parent=5 // pred_fallthru
        _
      %p227 = scmp.le.s32.totalorder 1, %s18
      %p228 = scmp.lt.s32.totalorder %s18, 3
      %p229 = pnand %p227, %p228
      %p230 = pneg %p229
      // Predicated region
      $region41: #{tpu_custom_call.1} parent=5 // pred_check
        _
      $region42: #{tpu_custom_call.1} parent=5 // pred_check_branch
        %232 = sbr.rel (%p229) target = $region44
      $region43: #{tpu_custom_call.1} parent=5 // pred_region
        %s233 = ssub.s32 %s18, 1
        %s234 = sand.u32 %s31, 1
        %s235 = scalar_lea.sflag [#allocation3], %s234
        %s236 = sand.u32 %s31, 1
        %s237 = smul.addr %s236, 8
        %s238 = scalar_lea.vmem [#allocation2], %s237
        // Predicated region
        $region45: #{tpu_custom_call.1} parent=43 // pred_check
          %p239 = pneg %p44
        $region46: #{tpu_custom_call.1} parent=43 // pred_check_branch
          %241 = sbr.rel (%p239) target = $region48
        $region47: #{tpu_custom_call.1} parent=43 // pred_region
          %242 = dma.done %s235, 128
        $region48: #{tpu_custom_call.1} parent=43 // pred_fallthru
          _
        %s243 = sand.u32 %s31, 1
        %s244 = scalar_lea.sflag [#allocation3], %s243
        %s245 = sand.u32 %s31, 1
        %s246 = smul.addr %s245, 8
        %s247 = scalar_lea.vmem [#allocation2], %s246
        %p248 = pneg %p44
        %p249 = pneg %p41
        %p250 = pneg %p65
        %p251 = pneg %p62
        %p252 = pneg %p86
        %p253 = pneg %p83
        %p254 = pneg %p107
        %p255 = pneg %p104
        %p256 = pneg %p128
        %p257 = pneg %p125
        %p258 = pneg %p149
        %p259 = pneg %p146
        %p260 = pneg %p175
        %p261 = pneg %p172
        %s262 = sand.u32 %s162, 1
        %s263 = scalar_lea.sflag [#allocation4], %s262
        %s264 = sand.u32 %s162, 1
        %s265 = smul.addr %s264, 2
        %s266 = scalar_lea.vmem [#allocation5], %s265
        %v267 = vld [vmem:[%s238] sm:$0xff]
        %v268 = vld [vmem:[%s5] sm:$0x3f]
        %v269 = vld [vmem:[%s1] sm:$0xff]
        %v270 = vld [vmem:[%s1 + $0x8] sm:$0xff]
        %v271 = vld [vmem:[%s1 + $0x10] sm:$0xff]
        %v272 = vld [vmem:[%s1 + $0x18] sm:$0xff]
        %v273 = vlaneseq
        %v274 = vshrl.u32 %v273, 7
        %v275 = vsub.s32 0, %v274
        %v276 = vrot.slane %v268, %v275
        %vm277 = vcmask 261120
        %v279 = vsel %vm277, %v267, 0
        %281 = vmatprep.subr.mxu0 0.0
        %282 = vmatpush1.msra.mxu0 0.0
        %283 = vmatprep.subr.mxu0 0.0
        %284 = vmatpush1.msra.mxu0 0.0
        %285 = vmatprep.subr.mxu0 0.0
        %286 = vmatpush1.msra.mxu0 0.0
        %287 = vmatprep.subr.mxu0 0.0
        %288 = vmatpush1.msra.mxu0 0.0
        %289 = vmatprep.subr.mxu0 0.0
        %290 = vmatpush1.msra.mxu0 0.0
        %291 = vmatprep.subr.mxu0 0.0
        %292 = vmatpush1.msra.mxu0 0.0
        %293 = vmatprep.subr.mxu0 0.0
        %294 = vmatpush1.msra.mxu0 0.0
        %295 = vmatprep.subr.mxu0 0.0
        %296 = vmatpush1.msra.mxu0 0.0
        %297 = vmatprep.subr.mxu0 0.0
        %298 = vmatpush1.msra.mxu0 0.0
        %299 = vmatprep.subr.mxu0 0.0
        %300 = vmatpush1.msra.mxu0 0.0
        %301 = vmatprep.subr.mxu0 0.0
        %302 = vmatpush1.msra.mxu0 0.0
        %303 = vmatprep.subr.mxu0 0.0
        %304 = vmatpush1.msra.mxu0 0.0
        %305 = vmatprep.subr.mxu0 0.0
        %306 = vmatpush1.msra.mxu0 %v272
        %307 = vmatprep.subr.mxu0 0.0
        %308 = vmatpush1.msra.mxu0 %v271
        %309 = vmatprep.subr.mxu0 0.0
        %310 = vmatpush1.msra.mxu0 %v270
        %311 = vmatprep.subr.mxu0 0.0
        %312 = vmatpush1.msra.mxu0 %v269
        %313 = vmatprep.subr.mxu0 0.0
        %314 = vmatpush2.msra.mxu0 0.0
        %315 = vmatprep.subr.mxu0 0.0
        %316 = vmatpush2.msra.mxu0 0.0
        %317 = vmatprep.subr.mxu0 0.0
        %318 = vmatpush2.msra.mxu0 0.0
        %319 = vmatprep.subr.mxu0 0.0
        %320 = vmatpush2.msra.mxu0 0.0
        %321 = vmatprep.subr.mxu0 0.0
        %322 = vmatpush2.msra.mxu0 0.0
        %323 = vmatprep.subr.mxu0 0.0
        %324 = vmatpush2.msra.mxu0 0.0
        %325 = vmatprep.subr.mxu0 0.0
        %326 = vmatpush2.msra.mxu0 0.0
        %327 = vmatprep.subr.mxu0 0.0
        %328 = vmatpush2.msra.mxu0 0.0
        %329 = vmatprep.subr.mxu0 0.0
        %330 = vmatpush2.msra.mxu0 0.0
        %331 = vmatprep.subr.mxu0 0.0
        %332 = vmatpush2.msra.mxu0 0.0
        %333 = vmatprep.subr.mxu0 0.0
        %334 = vmatpush2.msra.mxu0 0.0
        %335 = vmatprep.subr.mxu0 0.0
        %336 = vmatpush2.msra.mxu0 0.0
        %337 = vmatprep.subr.mxu0 0.0
        %338 = vmatpush2.msra.mxu0 0.0
        %339 = vmatprep.subr.mxu0 0.0
        %340 = vmatpush2.msra.mxu0 0.0
        %341 = vmatprep.subr.mxu0 0.0
        %342 = vmatpush2.msra.mxu0 0.0
        %343 = vmatprep.subr.mxu0 0.0
        %344 = vmatpush2.msra.mxu0 0.0
        %345 = vmatprep.mubr.f32.mxu0 0.0
        %346 = vmatmul.mubr.f32.gmra.mxu0 %v279
        %v347 = vpop.f32.mrf.mxu0
        %v348 = vadd.f32 %v276, %v347
        %v349 = vpop.f32.mrf.mxu0
        %350 = vdwg.mxu0
        %352 = vrot.lane.b32.xlu0 %v348, 96
        %v353 = vpop.permute.xlu0 %352
        %vm354 = vcmask 64512
        %v355 = vsel %vm354, %v348, 0
        %v357 = vsel %vm354, %v353, 0
        %359 = vmatprep.subr.mxu0 0.0
        %360 = vmatpush1.xpose.msra.mxu0 0.0
        %361 = vmatprep.subr.mxu0 0.0
        %362 = vmatpush1.xpose.msra.mxu0 0.0
        %363 = vmatprep.subr.mxu0 0.0
        %364 = vmatpush1.xpose.msra.mxu0 0.0
        %365 = vmatprep.subr.mxu0 0.0
        %366 = vmatpush1.xpose.msra.mxu0 0.0
        %367 = vmatprep.subr.mxu0 0.0
        %368 = vmatpush1.xpose.msra.mxu0 0.0
        %369 = vmatprep.subr.mxu0 0.0
        %370 = vmatpush1.xpose.msra.mxu0 0.0
        %371 = vmatprep.subr.mxu0 0.0
        %372 = vmatpush1.xpose.msra.mxu0 0.0
        %373 = vmatprep.subr.mxu0 0.0
        %374 = vmatpush1.xpose.msra.mxu0 0.0
        %375 = vmatprep.subr.mxu0 0.0
        %376 = vmatpush1.xpose.msra.mxu0 0.0
        %377 = vmatprep.subr.mxu0 0.0
        %378 = vmatpush1.xpose.msra.mxu0 0.0
        %379 = vmatprep.subr.mxu0 0.0
        %380 = vmatpush1.xpose.msra.mxu0 0.0
        %381 = vmatprep.subr.mxu0 0.0
        %382 = vmatpush1.xpose.msra.mxu0 0.0
        %383 = vmatprep.subr.mxu0 0.0
        %384 = vmatpush1.xpose.msra.mxu0 0.0
        %385 = vmatprep.subr.mxu0 0.0
        %386 = vmatpush1.xpose.msra.mxu0 0.0
        %387 = vmatprep.subr.mxu0 0.0
        %388 = vmatpush1.xpose.msra.mxu0 0.0
        %389 = vmatprep.subr.mxu0 0.0
        %390 = vmatpush1.xpose.msra.mxu0 %v357
        %391 = vmatprep.subr.mxu0 0.0
        %392 = vmatpush2.xpose.msra.mxu0 0.0
        %393 = vmatprep.subr.mxu0 0.0
        %394 = vmatpush2.xpose.msra.mxu0 0.0
        %395 = vmatprep.subr.mxu0 0.0
        %396 = vmatpush2.xpose.msra.mxu0 0.0
        %397 = vmatprep.subr.mxu0 0.0
        %398 = vmatpush2.xpose.msra.mxu0 0.0
        %399 = vmatprep.subr.mxu0 0.0
        %400 = vmatpush2.xpose.msra.mxu0 0.0
        %401 = vmatprep.subr.mxu0 0.0
        %402 = vmatpush2.xpose.msra.mxu0 0.0
        %403 = vmatprep.subr.mxu0 0.0
        %404 = vmatpush2.xpose.msra.mxu0 0.0
        %405 = vmatprep.subr.mxu0 0.0
        %406 = vmatpush2.xpose.msra.mxu0 0.0
        %407 = vmatprep.subr.mxu0 0.0
        %408 = vmatpush2.xpose.msra.mxu0 0.0
        %409 = vmatprep.subr.mxu0 0.0
        %410 = vmatpush2.xpose.msra.mxu0 0.0
        %411 = vmatprep.subr.mxu0 0.0
        %412 = vmatpush2.xpose.msra.mxu0 0.0
        %413 = vmatprep.subr.mxu0 0.0
        %414 = vmatpush2.xpose.msra.mxu0 0.0
        %415 = vmatprep.subr.mxu0 0.0
        %416 = vmatpush2.xpose.msra.mxu0 0.0
        %417 = vmatprep.subr.mxu0 0.0
        %418 = vmatpush2.xpose.msra.mxu0 0.0
        %419 = vmatprep.subr.mxu0 0.0
        %420 = vmatpush2.xpose.msra.mxu0 0.0
        %421 = vmatprep.subr.mxu0 0.0
        %422 = vmatpush2.xpose.msra.mxu0 0.0
        %423 = vmatprep.mubr.f32.mxu0 0.0
        %424 = vmatmul.mubr.f32.gmra.mxu0 %v355
        %v425 = vpop.f32.mrf.mxu0
        %v426 = vadd.f32 0.0, %v425
        %v427 = vpop.f32.mrf.mxu0
        %428 = vdwg.mxu0
        %v429 = vmul.f32 %v426, 0.35355338
        %v430 = vsel %vm354, %v429, -inf
        %431 = vmax.xlane.f32.xlu0 %v430
        %v432 = vpop.xlane.xlu0 %431
        %v433 = vsub.f32 %v429, %v432
        %v434 = vmul.f32 %v433, 1.442695
        %v435 = vpow.pop %v434
        %v436 = vsel %vm354, %v435, 0.0
        %437 = vadd.xlane.f32.xlu0 %v436
        %v438 = vpop.xlane.xlu0 %437
        %v439 = vrcp.pop %v438
        %v440 = vmul.f32 %v435, %v439
        %441 = vrot.lane.b32.xlu0 %v348, 64
        %v442 = vpop.permute.xlu0 %441
        %v445 = vsel %vm354, %v440, 0
        %447 = vmatprep.subr.mxu0 0.0
        %448 = vmatpush1.msra.mxu0 0.0
        %449 = vmatprep.subr.mxu0 0.0
        %450 = vmatpush1.msra.mxu0 0.0
        %451 = vmatprep.subr.mxu0 0.0
        %452 = vmatpush1.msra.mxu0 0.0
        %453 = vmatprep.subr.mxu0 0.0
        %454 = vmatpush1.msra.mxu0 0.0
        %455 = vmatprep.subr.mxu0 0.0
        %456 = vmatpush1.msra.mxu0 0.0
        %457 = vmatprep.subr.mxu0 0.0
        %458 = vmatpush1.msra.mxu0 0.0
        %459 = vmatprep.subr.mxu0 0.0
        %460 = vmatpush1.msra.mxu0 0.0
        %461 = vmatprep.subr.mxu0 0.0
        %462 = vmatpush1.msra.mxu0 0.0
        %463 = vmatprep.subr.mxu0 0.0
        %464 = vmatpush1.msra.mxu0 0.0
        %465 = vmatprep.subr.mxu0 0.0
        %466 = vmatpush1.msra.mxu0 0.0
        %467 = vmatprep.subr.mxu0 0.0
        %468 = vmatpush1.msra.mxu0 0.0
        %469 = vmatprep.subr.mxu0 0.0
        %470 = vmatpush1.msra.mxu0 0.0
        %471 = vmatprep.subr.mxu0 0.0
        %472 = vmatpush1.msra.mxu0 0.0
        %473 = vmatprep.subr.mxu0 0.0
        %474 = vmatpush1.msra.mxu0 0.0
        %475 = vmatprep.subr.mxu0 0.0
        %476 = vmatpush1.msra.mxu0 0.0
        %477 = vmatprep.subr.mxu0 0.0
        %478 = vmatpush1.msra.mxu0 %v442
        %479 = vmatprep.subr.mxu0 0.0
        %480 = vmatpush2.msra.mxu0 0.0
        %481 = vmatprep.subr.mxu0 0.0
        %482 = vmatpush2.msra.mxu0 0.0
        %483 = vmatprep.subr.mxu0 0.0
        %484 = vmatpush2.msra.mxu0 0.0
        %485 = vmatprep.subr.mxu0 0.0
        %486 = vmatpush2.msra.mxu0 0.0
        %487 = vmatprep.subr.mxu0 0.0
        %488 = vmatpush2.msra.mxu0 0.0
        %489 = vmatprep.subr.mxu0 0.0
        %490 = vmatpush2.msra.mxu0 0.0
        %491 = vmatprep.subr.mxu0 0.0
        %492 = vmatpush2.msra.mxu0 0.0
        %493 = vmatprep.subr.mxu0 0.0
        %494 = vmatpush2.msra.mxu0 0.0
        %495 = vmatprep.subr.mxu0 0.0
        %496 = vmatpush2.msra.mxu0 0.0
        %497 = vmatprep.subr.mxu0 0.0
        %498 = vmatpush2.msra.mxu0 0.0
        %499 = vmatprep.subr.mxu0 0.0
        %500 = vmatpush2.msra.mxu0 0.0
        %501 = vmatprep.subr.mxu0 0.0
        %502 = vmatpush2.msra.mxu0 0.0
        %503 = vmatprep.subr.mxu0 0.0
        %504 = vmatpush2.msra.mxu0 0.0
        %505 = vmatprep.subr.mxu0 0.0
        %506 = vmatpush2.msra.mxu0 0.0
        %507 = vmatprep.subr.mxu0 0.0
        %508 = vmatpush2.msra.mxu0 0.0
        %509 = vmatprep.subr.mxu0 0.0
        %510 = vmatpush2.msra.mxu0 0.0
        %511 = vmatprep.mubr.f32.mxu0 0.0
        %512 = vmatmul.mubr.f32.gmra.mxu0 %v445
        %v513 = vpop.f32.mrf.mxu0
        %v514 = vadd.f32 0.0, %v513
        %v515 = vpop.f32.mrf.mxu0
        %516 = vdwg.mxu0
        %v517 = vld [vmem:[%s2] sm:$0xff]
        %518 = vrot.lane.b32.xlu0 %v348, 120
        %v519 = vpop.permute.xlu0 %518
        %520 = vrot.lane.b32.xlu0 %v348, 88
        %v521 = vpop.permute.xlu0 %520
        %v522 = vsel %vm354, %v519, 0
        %v524 = vsel %vm354, %v521, 0
        %526 = vmatprep.subr.mxu0 0.0
        %527 = vmatpush1.xpose.msra.mxu0 0.0
        %528 = vmatprep.subr.mxu0 0.0
        %529 = vmatpush1.xpose.msra.mxu0 0.0
        %530 = vmatprep.subr.mxu0 0.0
        %531 = vmatpush1.xpose.msra.mxu0 0.0
        %532 = vmatprep.subr.mxu0 0.0
        %533 = vmatpush1.xpose.msra.mxu0 0.0
        %534 = vmatprep.subr.mxu0 0.0
        %535 = vmatpush1.xpose.msra.mxu0 0.0
        %536 = vmatprep.subr.mxu0 0.0
        %537 = vmatpush1.xpose.msra.mxu0 0.0
        %538 = vmatprep.subr.mxu0 0.0
        %539 = vmatpush1.xpose.msra.mxu0 0.0
        %540 = vmatprep.subr.mxu0 0.0
        %541 = vmatpush1.xpose.msra.mxu0 0.0
        %542 = vmatprep.subr.mxu0 0.0
        %543 = vmatpush1.xpose.msra.mxu0 0.0
        %544 = vmatprep.subr.mxu0 0.0
        %545 = vmatpush1.xpose.msra.mxu0 0.0
        %546 = vmatprep.subr.mxu0 0.0
        %547 = vmatpush1.xpose.msra.mxu0 0.0
        %548 = vmatprep.subr.mxu0 0.0
        %549 = vmatpush1.xpose.msra.mxu0 0.0
        %550 = vmatprep.subr.mxu0 0.0
        %551 = vmatpush1.xpose.msra.mxu0 0.0
        %552 = vmatprep.subr.mxu0 0.0
        %553 = vmatpush1.xpose.msra.mxu0 0.0
        %554 = vmatprep.subr.mxu0 0.0
        %555 = vmatpush1.xpose.msra.mxu0 0.0
        %556 = vmatprep.subr.mxu0 0.0
        %557 = vmatpush1.xpose.msra.mxu0 %v524
        %558 = vmatprep.subr.mxu0 0.0
        %559 = vmatpush2.xpose.msra.mxu0 0.0
        %560 = vmatprep.subr.mxu0 0.0
        %561 = vmatpush2.xpose.msra.mxu0 0.0
        %562 = vmatprep.subr.mxu0 0.0
        %563 = vmatpush2.xpose.msra.mxu0 0.0
        %564 = vmatprep.subr.mxu0 0.0
        %565 = vmatpush2.xpose.msra.mxu0 0.0
        %566 = vmatprep.subr.mxu0 0.0
        %567 = vmatpush2.xpose.msra.mxu0 0.0
        %568 = vmatprep.subr.mxu0 0.0
        %569 = vmatpush2.xpose.msra.mxu0 0.0
        %570 = vmatprep.subr.mxu0 0.0
        %571 = vmatpush2.xpose.msra.mxu0 0.0
        %572 = vmatprep.subr.mxu0 0.0
        %573 = vmatpush2.xpose.msra.mxu0 0.0
        %574 = vmatprep.subr.mxu0 0.0
        %575 = vmatpush2.xpose.msra.mxu0 0.0
        %576 = vmatprep.subr.mxu0 0.0
        %577 = vmatpush2.xpose.msra.mxu0 0.0
        %578 = vmatprep.subr.mxu0 0.0
        %579 = vmatpush2.xpose.msra.mxu0 0.0
        %580 = vmatprep.subr.mxu0 0.0
        %581 = vmatpush2.xpose.msra.mxu0 0.0
        %582 = vmatprep.subr.mxu0 0.0
        %583 = vmatpush2.xpose.msra.mxu0 0.0
        %584 = vmatprep.subr.mxu0 0.0
        %585 = vmatpush2.xpose.msra.mxu0 0.0
        %586 = vmatprep.subr.mxu0 0.0
        %587 = vmatpush2.xpose.msra.mxu0 0.0
        %588 = vmatprep.subr.mxu0 0.0
        %589 = vmatpush2.xpose.msra.mxu0 0.0
        %590 = vmatprep.mubr.f32.mxu0 0.0
        %591 = vmatmul.mubr.f32.gmra.mxu0 %v522
        %v592 = vpop.f32.mrf.mxu0
        %v593 = vadd.f32 0.0, %v592
        %v594 = vpop.f32.mrf.mxu0
        %595 = vdwg.mxu0
        %v596 = vmul.f32 %v593, 0.35355338
        %v597 = vsel %vm354, %v596, -inf
        %598 = vmax.xlane.f32.xlu0 %v597
        %v599 = vpop.xlane.xlu0 %598
        %v600 = vsub.f32 %v596, %v599
        %v601 = vmul.f32 %v600, 1.442695
        %v602 = vpow.pop %v601
        %v603 = vsel %vm354, %v602, 0.0
        %604 = vadd.xlane.f32.xlu0 %v603
        %v605 = vpop.xlane.xlu0 %604
        %v606 = vrcp.pop %v605
        %v607 = vmul.f32 %v602, %v606
        %608 = vrot.lane.b32.xlu0 %v348, 56
        %v609 = vpop.permute.xlu0 %608
        %v612 = vsel %vm354, %v607, 0
        %614 = vmatprep.subr.mxu0 0.0
        %615 = vmatpush1.msra.mxu0 0.0
        %616 = vmatprep.subr.mxu0 0.0
        %617 = vmatpush1.msra.mxu0 0.0
        %618 = vmatprep.subr.mxu0 0.0
        %619 = vmatpush1.msra.mxu0 0.0
        %620 = vmatprep.subr.mxu0 0.0
        %621 = vmatpush1.msra.mxu0 0.0
        %622 = vmatprep.subr.mxu0 0.0
        %623 = vmatpush1.msra.mxu0 0.0
        %624 = vmatprep.subr.mxu0 0.0
        %625 = vmatpush1.msra.mxu0 0.0
        %626 = vmatprep.subr.mxu0 0.0
        %627 = vmatpush1.msra.mxu0 0.0
        %628 = vmatprep.subr.mxu0 0.0
        %629 = vmatpush1.msra.mxu0 0.0
        %630 = vmatprep.subr.mxu0 0.0
        %631 = vmatpush1.msra.mxu0 0.0
        %632 = vmatprep.subr.mxu0 0.0
        %633 = vmatpush1.msra.mxu0 0.0
        %634 = vmatprep.subr.mxu0 0.0
        %635 = vmatpush1.msra.mxu0 0.0
        %636 = vmatprep.subr.mxu0 0.0
        %637 = vmatpush1.msra.mxu0 0.0
        %638 = vmatprep.subr.mxu0 0.0
        %639 = vmatpush1.msra.mxu0 0.0
        %640 = vmatprep.subr.mxu0 0.0
        %641 = vmatpush1.msra.mxu0 0.0
        %642 = vmatprep.subr.mxu0 0.0
        %643 = vmatpush1.msra.mxu0 0.0
        %644 = vmatprep.subr.mxu0 0.0
        %645 = vmatpush1.msra.mxu0 %v609
        %646 = vmatprep.subr.mxu0 0.0
        %647 = vmatpush2.msra.mxu0 0.0
        %648 = vmatprep.subr.mxu0 0.0
        %649 = vmatpush2.msra.mxu0 0.0
        %650 = vmatprep.subr.mxu0 0.0
        %651 = vmatpush2.msra.mxu0 0.0
        %652 = vmatprep.subr.mxu0 0.0
        %653 = vmatpush2.msra.mxu0 0.0
        %654 = vmatprep.subr.mxu0 0.0
        %655 = vmatpush2.msra.mxu0 0.0
        %656 = vmatprep.subr.mxu0 0.0
        %657 = vmatpush2.msra.mxu0 0.0
        %658 = vmatprep.subr.mxu0 0.0
        %659 = vmatpush2.msra.mxu0 0.0
        %660 = vmatprep.subr.mxu0 0.0
        %661 = vmatpush2.msra.mxu0 0.0
        %662 = vmatprep.subr.mxu0 0.0
        %663 = vmatpush2.msra.mxu0 0.0
        %664 = vmatprep.subr.mxu0 0.0
        %665 = vmatpush2.msra.mxu0 0.0
        %666 = vmatprep.subr.mxu0 0.0
        %667 = vmatpush2.msra.mxu0 0.0
        %668 = vmatprep.subr.mxu0 0.0
        %669 = vmatpush2.msra.mxu0 0.0
        %670 = vmatprep.subr.mxu0 0.0
        %671 = vmatpush2.msra.mxu0 0.0
        %672 = vmatprep.subr.mxu0 0.0
        %673 = vmatpush2.msra.mxu0 0.0
        %674 = vmatprep.subr.mxu0 0.0
        %675 = vmatpush2.msra.mxu0 0.0
        %676 = vmatprep.subr.mxu0 0.0
        %677 = vmatpush2.msra.mxu0 0.0
        %678 = vmatprep.mubr.f32.mxu0 0.0
        %679 = vmatmul.mubr.f32.gmra.mxu0 %v612
        %v680 = vpop.f32.mrf.mxu0
        %v681 = vadd.f32 0.0, %v680
        %v682 = vpop.f32.mrf.mxu0
        %683 = vdwg.mxu0
        %v684 = vld [vmem:[%s2 + $0x8] sm:$0xff]
        %v686 = vsel %vm354, %v681, 0
        %688 = vmatprep.subr.mxu0 0.0
        %689 = vmatpush1.msra.mxu0 0.0
        %690 = vmatprep.subr.mxu0 0.0
        %691 = vmatpush1.msra.mxu0 0.0
        %692 = vmatprep.subr.mxu0 0.0
        %693 = vmatpush1.msra.mxu0 0.0
        %694 = vmatprep.subr.mxu0 0.0
        %695 = vmatpush1.msra.mxu0 0.0
        %696 = vmatprep.subr.mxu0 0.0
        %697 = vmatpush1.msra.mxu0 0.0
        %698 = vmatprep.subr.mxu0 0.0
        %699 = vmatpush1.msra.mxu0 0.0
        %700 = vmatprep.subr.mxu0 0.0
        %701 = vmatpush1.msra.mxu0 0.0
        %702 = vmatprep.subr.mxu0 0.0
        %703 = vmatpush1.msra.mxu0 0.0
        %704 = vmatprep.subr.mxu0 0.0
        %705 = vmatpush1.msra.mxu0 0.0
        %706 = vmatprep.subr.mxu0 0.0
        %707 = vmatpush1.msra.mxu0 0.0
        %708 = vmatprep.subr.mxu0 0.0
        %709 = vmatpush1.msra.mxu0 0.0
        %710 = vmatprep.subr.mxu0 0.0
        %711 = vmatpush1.msra.mxu0 0.0
        %712 = vmatprep.subr.mxu0 0.0
        %713 = vmatpush1.msra.mxu0 0.0
        %714 = vmatprep.subr.mxu0 0.0
        %715 = vmatpush1.msra.mxu0 0.0
        %716 = vmatprep.subr.mxu0 0.0
        %717 = vmatpush1.msra.mxu0 0.0
        %718 = vmatprep.subr.mxu0 0.0
        %719 = vmatpush1.msra.mxu0 %v684
        %720 = vmatprep.subr.mxu0 0.0
        %721 = vmatpush2.msra.mxu0 0.0
        %722 = vmatprep.subr.mxu0 0.0
        %723 = vmatpush2.msra.mxu0 0.0
        %724 = vmatprep.subr.mxu0 0.0
        %725 = vmatpush2.msra.mxu0 0.0
        %726 = vmatprep.subr.mxu0 0.0
        %727 = vmatpush2.msra.mxu0 0.0
        %728 = vmatprep.subr.mxu0 0.0
        %729 = vmatpush2.msra.mxu0 0.0
        %730 = vmatprep.subr.mxu0 0.0
        %731 = vmatpush2.msra.mxu0 0.0
        %732 = vmatprep.subr.mxu0 0.0
        %733 = vmatpush2.msra.mxu0 0.0
        %734 = vmatprep.subr.mxu0 0.0
        %735 = vmatpush2.msra.mxu0 0.0
        %736 = vmatprep.subr.mxu0 0.0
        %737 = vmatpush2.msra.mxu0 0.0
        %738 = vmatprep.subr.mxu0 0.0
        %739 = vmatpush2.msra.mxu0 0.0
        %740 = vmatprep.subr.mxu0 0.0
        %741 = vmatpush2.msra.mxu0 0.0
        %742 = vmatprep.subr.mxu0 0.0
        %743 = vmatpush2.msra.mxu0 0.0
        %744 = vmatprep.subr.mxu0 0.0
        %745 = vmatpush2.msra.mxu0 0.0
        %746 = vmatprep.subr.mxu0 0.0
        %747 = vmatpush2.msra.mxu0 0.0
        %748 = vmatprep.subr.mxu0 0.0
        %749 = vmatpush2.msra.mxu0 0.0
        %750 = vmatprep.subr.mxu0 0.0
        %751 = vmatpush2.msra.mxu0 0.0
        %752 = vmatprep.mubr.f32.mxu0 0.0
        %753 = vmatmul.mubr.f32.gmra.mxu0 %v686
        %v754 = vpop.f32.mrf.mxu0
        %v755 = vadd.f32 0.0, %v754
        %v756 = vpop.f32.mrf.mxu0
        %757 = vdwg.mxu0
        %v759 = vsel %vm354, %v514, 0
        %761 = vmatprep.subr.mxu0 0.0
        %762 = vmatpush1.msra.mxu0 0.0
        %763 = vmatprep.subr.mxu0 0.0
        %764 = vmatpush1.msra.mxu0 0.0
        %765 = vmatprep.subr.mxu0 0.0
        %766 = vmatpush1.msra.mxu0 0.0
        %767 = vmatprep.subr.mxu0 0.0
        %768 = vmatpush1.msra.mxu0 0.0
        %769 = vmatprep.subr.mxu0 0.0
        %770 = vmatpush1.msra.mxu0 0.0
        %771 = vmatprep.subr.mxu0 0.0
        %772 = vmatpush1.msra.mxu0 0.0
        %773 = vmatprep.subr.mxu0 0.0
        %774 = vmatpush1.msra.mxu0 0.0
        %775 = vmatprep.subr.mxu0 0.0
        %776 = vmatpush1.msra.mxu0 0.0
        %777 = vmatprep.subr.mxu0 0.0
        %778 = vmatpush1.msra.mxu0 0.0
        %779 = vmatprep.subr.mxu0 0.0
        %780 = vmatpush1.msra.mxu0 0.0
        %781 = vmatprep.subr.mxu0 0.0
        %782 = vmatpush1.msra.mxu0 0.0
        %783 = vmatprep.subr.mxu0 0.0
        %784 = vmatpush1.msra.mxu0 0.0
        %785 = vmatprep.subr.mxu0 0.0
        %786 = vmatpush1.msra.mxu0 0.0
        %787 = vmatprep.subr.mxu0 0.0
        %788 = vmatpush1.msra.mxu0 0.0
        %789 = vmatprep.subr.mxu0 0.0
        %790 = vmatpush1.msra.mxu0 0.0
        %791 = vmatprep.subr.mxu0 0.0
        %792 = vmatpush1.msra.mxu0 %v517
        %793 = vmatprep.subr.mxu0 0.0
        %794 = vmatpush2.msra.mxu0 0.0
        %795 = vmatprep.subr.mxu0 0.0
        %796 = vmatpush2.msra.mxu0 0.0
        %797 = vmatprep.subr.mxu0 0.0
        %798 = vmatpush2.msra.mxu0 0.0
        %799 = vmatprep.subr.mxu0 0.0
        %800 = vmatpush2.msra.mxu0 0.0
        %801 = vmatprep.subr.mxu0 0.0
        %802 = vmatpush2.msra.mxu0 0.0
        %803 = vmatprep.subr.mxu0 0.0
        %804 = vmatpush2.msra.mxu0 0.0
        %805 = vmatprep.subr.mxu0 0.0
        %806 = vmatpush2.msra.mxu0 0.0
        %807 = vmatprep.subr.mxu0 0.0
        %808 = vmatpush2.msra.mxu0 0.0
        %809 = vmatprep.subr.mxu0 0.0
        %810 = vmatpush2.msra.mxu0 0.0
        %811 = vmatprep.subr.mxu0 0.0
        %812 = vmatpush2.msra.mxu0 0.0
        %813 = vmatprep.subr.mxu0 0.0
        %814 = vmatpush2.msra.mxu0 0.0
        %815 = vmatprep.subr.mxu0 0.0
        %816 = vmatpush2.msra.mxu0 0.0
        %817 = vmatprep.subr.mxu0 0.0
        %818 = vmatpush2.msra.mxu0 0.0
        %819 = vmatprep.subr.mxu0 0.0
        %820 = vmatpush2.msra.mxu0 0.0
        %821 = vmatprep.subr.mxu0 0.0
        %822 = vmatpush2.msra.mxu0 0.0
        %823 = vmatprep.subr.mxu0 0.0
        %824 = vmatpush2.msra.mxu0 0.0
        %825 = vmatprep.mubr.f32.mxu0 0.0
        %826 = vmatmul.mubr.f32.gmra.mxu0 %v759
        %v827 = vpop.f32.mrf.mxu0
        %v828 = vadd.f32 %v755, %v827
        %v829 = vpop.f32.mrf.mxu0
        %830 = vdwg.mxu0
        %831 = vrot.lane.b32.xlu0 %v348, 112
        %v832 = vpop.permute.xlu0 %831
        %833 = vrot.lane.b32.xlu0 %v348, 80
        %v834 = vpop.permute.xlu0 %833
        %v835 = vsel %vm354, %v832, 0
        %v837 = vsel %vm354, %v834, 0
        %839 = vmatprep.subr.mxu0 0.0
        %840 = vmatpush1.xpose.msra.mxu0 0.0
        %841 = vmatprep.subr.mxu0 0.0
        %842 = vmatpush1.xpose.msra.mxu0 0.0
        %843 = vmatprep.subr.mxu0 0.0
        %844 = vmatpush1.xpose.msra.mxu0 0.0
        %845 = vmatprep.subr.mxu0 0.0
        %846 = vmatpush1.xpose.msra.mxu0 0.0
        %847 = vmatprep.subr.mxu0 0.0
        %848 = vmatpush1.xpose.msra.mxu0 0.0
        %849 = vmatprep.subr.mxu0 0.0
        %850 = vmatpush1.xpose.msra.mxu0 0.0
        %851 = vmatprep.subr.mxu0 0.0
        %852 = vmatpush1.xpose.msra.mxu0 0.0
        %853 = vmatprep.subr.mxu0 0.0
        %854 = vmatpush1.xpose.msra.mxu0 0.0
        %855 = vmatprep.subr.mxu0 0.0
        %856 = vmatpush1.xpose.msra.mxu0 0.0
        %857 = vmatprep.subr.mxu0 0.0
        %858 = vmatpush1.xpose.msra.mxu0 0.0
        %859 = vmatprep.subr.mxu0 0.0
        %860 = vmatpush1.xpose.msra.mxu0 0.0
        %861 = vmatprep.subr.mxu0 0.0
        %862 = vmatpush1.xpose.msra.mxu0 0.0
        %863 = vmatprep.subr.mxu0 0.0
        %864 = vmatpush1.xpose.msra.mxu0 0.0
        %865 = vmatprep.subr.mxu0 0.0
        %866 = vmatpush1.xpose.msra.mxu0 0.0
        %867 = vmatprep.subr.mxu0 0.0
        %868 = vmatpush1.xpose.msra.mxu0 0.0
        %869 = vmatprep.subr.mxu0 0.0
        %870 = vmatpush1.xpose.msra.mxu0 %v837
        %871 = vmatprep.subr.mxu0 0.0
        %872 = vmatpush2.xpose.msra.mxu0 0.0
        %873 = vmatprep.subr.mxu0 0.0
        %874 = vmatpush2.xpose.msra.mxu0 0.0
        %875 = vmatprep.subr.mxu0 0.0
        %876 = vmatpush2.xpose.msra.mxu0 0.0
        %877 = vmatprep.subr.mxu0 0.0
        %878 = vmatpush2.xpose.msra.mxu0 0.0
        %879 = vmatprep.subr.mxu0 0.0
        %880 = vmatpush2.xpose.msra.mxu0 0.0
        %881 = vmatprep.subr.mxu0 0.0
        %882 = vmatpush2.xpose.msra.mxu0 0.0
        %883 = vmatprep.subr.mxu0 0.0
        %884 = vmatpush2.xpose.msra.mxu0 0.0
        %885 = vmatprep.subr.mxu0 0.0
        %886 = vmatpush2.xpose.msra.mxu0 0.0
        %887 = vmatprep.subr.mxu0 0.0
        %888 = vmatpush2.xpose.msra.mxu0 0.0
        %889 = vmatprep.subr.mxu0 0.0
        %890 = vmatpush2.xpose.msra.mxu0 0.0
        %891 = vmatprep.subr.mxu0 0.0
        %892 = vmatpush2.xpose.msra.mxu0 0.0
        %893 = vmatprep.subr.mxu0 0.0
        %894 = vmatpush2.xpose.msra.mxu0 0.0
        %895 = vmatprep.subr.mxu0 0.0
        %896 = vmatpush2.xpose.msra.mxu0 0.0
        %897 = vmatprep.subr.mxu0 0.0
        %898 = vmatpush2.xpose.msra.mxu0 0.0
        %899 = vmatprep.subr.mxu0 0.0
        %900 = vmatpush2.xpose.msra.mxu0 0.0
        %901 = vmatprep.subr.mxu0 0.0
        %902 = vmatpush2.xpose.msra.mxu0 0.0
        %903 = vmatprep.mubr.f32.mxu0 0.0
        %904 = vmatmul.mubr.f32.gmra.mxu0 %v835
        %v905 = vpop.f32.mrf.mxu0
        %v906 = vadd.f32 0.0, %v905
        %v907 = vpop.f32.mrf.mxu0
        %908 = vdwg.mxu0
        %v909 = vmul.f32 %v906, 0.35355338
        %v910 = vsel %vm354, %v909, -inf
        %911 = vmax.xlane.f32.xlu0 %v910
        %v912 = vpop.xlane.xlu0 %911
        %v913 = vsub.f32 %v909, %v912
        %v914 = vmul.f32 %v913, 1.442695
        %v915 = vpow.pop %v914
        %v916 = vsel %vm354, %v915, 0.0
        %917 = vadd.xlane.f32.xlu0 %v916
        %v918 = vpop.xlane.xlu0 %917
        %v919 = vrcp.pop %v918
        %v920 = vmul.f32 %v915, %v919
        %921 = vrot.lane.b32.xlu0 %v348, 48
        %v922 = vpop.permute.xlu0 %921
        %v925 = vsel %vm354, %v920, 0
        %927 = vmatprep.subr.mxu0 0.0
        %928 = vmatpush1.msra.mxu0 0.0
        %929 = vmatprep.subr.mxu0 0.0
        %930 = vmatpush1.msra.mxu0 0.0
        %931 = vmatprep.subr.mxu0 0.0
        %932 = vmatpush1.msra.mxu0 0.0
        %933 = vmatprep.subr.mxu0 0.0
        %934 = vmatpush1.msra.mxu0 0.0
        %935 = vmatprep.subr.mxu0 0.0
        %936 = vmatpush1.msra.mxu0 0.0
        %937 = vmatprep.subr.mxu0 0.0
        %938 = vmatpush1.msra.mxu0 0.0
        %939 = vmatprep.subr.mxu0 0.0
        %940 = vmatpush1.msra.mxu0 0.0
        %941 = vmatprep.subr.mxu0 0.0
        %942 = vmatpush1.msra.mxu0 0.0
        %943 = vmatprep.subr.mxu0 0.0
        %944 = vmatpush1.msra.mxu0 0.0
        %945 = vmatprep.subr.mxu0 0.0
        %946 = vmatpush1.msra.mxu0 0.0
        %947 = vmatprep.subr.mxu0 0.0
        %948 = vmatpush1.msra.mxu0 0.0
        %949 = vmatprep.subr.mxu0 0.0
        %950 = vmatpush1.msra.mxu0 0.0
        %951 = vmatprep.subr.mxu0 0.0
        %952 = vmatpush1.msra.mxu0 0.0
        %953 = vmatprep.subr.mxu0 0.0
        %954 = vmatpush1.msra.mxu0 0.0
        %955 = vmatprep.subr.mxu0 0.0
        %956 = vmatpush1.msra.mxu0 0.0
        %957 = vmatprep.subr.mxu0 0.0
        %958 = vmatpush1.msra.mxu0 %v922
        %959 = vmatprep.subr.mxu0 0.0
        %960 = vmatpush2.msra.mxu0 0.0
        %961 = vmatprep.subr.mxu0 0.0
        %962 = vmatpush2.msra.mxu0 0.0
        %963 = vmatprep.subr.mxu0 0.0
        %964 = vmatpush2.msra.mxu0 0.0
        %965 = vmatprep.subr.mxu0 0.0
        %966 = vmatpush2.msra.mxu0 0.0
        %967 = vmatprep.subr.mxu0 0.0
        %968 = vmatpush2.msra.mxu0 0.0
        %969 = vmatprep.subr.mxu0 0.0
        %970 = vmatpush2.msra.mxu0 0.0
        %971 = vmatprep.subr.mxu0 0.0
        %972 = vmatpush2.msra.mxu0 0.0
        %973 = vmatprep.subr.mxu0 0.0
        %974 = vmatpush2.msra.mxu0 0.0
        %975 = vmatprep.subr.mxu0 0.0
        %976 = vmatpush2.msra.mxu0 0.0
        %977 = vmatprep.subr.mxu0 0.0
        %978 = vmatpush2.msra.mxu0 0.0
        %979 = vmatprep.subr.mxu0 0.0
        %980 = vmatpush2.msra.mxu0 0.0
        %981 = vmatprep.subr.mxu0 0.0
        %982 = vmatpush2.msra.mxu0 0.0
        %983 = vmatprep.subr.mxu0 0.0
        %984 = vmatpush2.msra.mxu0 0.0
        %985 = vmatprep.subr.mxu0 0.0
        %986 = vmatpush2.msra.mxu0 0.0
        %987 = vmatprep.subr.mxu0 0.0
        %988 = vmatpush2.msra.mxu0 0.0
        %989 = vmatprep.subr.mxu0 0.0
        %990 = vmatpush2.msra.mxu0 0.0
        %991 = vmatprep.mubr.f32.mxu0 0.0
        %992 = vmatmul.mubr.f32.gmra.mxu0 %v925
        %v993 = vpop.f32.mrf.mxu0
        %v994 = vadd.f32 0.0, %v993
        %v995 = vpop.f32.mrf.mxu0
        %996 = vdwg.mxu0
        %v997 = vld [vmem:[%s2 + $0x10] sm:$0xff]
        %v999 = vsel %vm354, %v994, 0
        %1001 = vmatprep.subr.mxu0 0.0
        %1002 = vmatpush1.msra.mxu0 0.0
        %1003 = vmatprep.subr.mxu0 0.0
        %1004 = vmatpush1.msra.mxu0 0.0
        %1005 = vmatprep.subr.mxu0 0.0
        %1006 = vmatpush1.msra.mxu0 0.0
        %1007 = vmatprep.subr.mxu0 0.0
        %1008 = vmatpush1.msra.mxu0 0.0
        %1009 = vmatprep.subr.mxu0 0.0
        %1010 = vmatpush1.msra.mxu0 0.0
        %1011 = vmatprep.subr.mxu0 0.0
        %1012 = vmatpush1.msra.mxu0 0.0
        %1013 = vmatprep.subr.mxu0 0.0
        %1014 = vmatpush1.msra.mxu0 0.0
        %1015 = vmatprep.subr.mxu0 0.0
        %1016 = vmatpush1.msra.mxu0 0.0
        %1017 = vmatprep.subr.mxu0 0.0
        %1018 = vmatpush1.msra.mxu0 0.0
        %1019 = vmatprep.subr.mxu0 0.0
        %1020 = vmatpush1.msra.mxu0 0.0
        %1021 = vmatprep.subr.mxu0 0.0
        %1022 = vmatpush1.msra.mxu0 0.0
        %1023 = vmatprep.subr.mxu0 0.0
        %1024 = vmatpush1.msra.mxu0 0.0
        %1025 = vmatprep.subr.mxu0 0.0
        %1026 = vmatpush1.msra.mxu0 0.0
        %1027 = vmatprep.subr.mxu0 0.0
        %1028 = vmatpush1.msra.mxu0 0.0
        %1029 = vmatprep.subr.mxu0 0.0
        %1030 = vmatpush1.msra.mxu0 0.0
        %1031 = vmatprep.subr.mxu0 0.0
        %1032 = vmatpush1.msra.mxu0 %v997
        %1033 = vmatprep.subr.mxu0 0.0
        %1034 = vmatpush2.msra.mxu0 0.0
        %1035 = vmatprep.subr.mxu0 0.0
        %1036 = vmatpush2.msra.mxu0 0.0
        %1037 = vmatprep.subr.mxu0 0.0
        %1038 = vmatpush2.msra.mxu0 0.0
        %1039 = vmatprep.subr.mxu0 0.0
        %1040 = vmatpush2.msra.mxu0 0.0
        %1041 = vmatprep.subr.mxu0 0.0
        %1042 = vmatpush2.msra.mxu0 0.0
        %1043 = vmatprep.subr.mxu0 0.0
        %1044 = vmatpush2.msra.mxu0 0.0
        %1045 = vmatprep.subr.mxu0 0.0
        %1046 = vmatpush2.msra.mxu0 0.0
        %1047 = vmatprep.subr.mxu0 0.0
        %1048 = vmatpush2.msra.mxu0 0.0
        %1049 = vmatprep.subr.mxu0 0.0
        %1050 = vmatpush2.msra.mxu0 0.0
        %1051 = vmatprep.subr.mxu0 0.0
        %1052 = vmatpush2.msra.mxu0 0.0
        %1053 = vmatprep.subr.mxu0 0.0
        %1054 = vmatpush2.msra.mxu0 0.0
        %1055 = vmatprep.subr.mxu0 0.0
        %1056 = vmatpush2.msra.mxu0 0.0
        %1057 = vmatprep.subr.mxu0 0.0
        %1058 = vmatpush2.msra.mxu0 0.0
        %1059 = vmatprep.subr.mxu0 0.0
        %1060 = vmatpush2.msra.mxu0 0.0
        %1061 = vmatprep.subr.mxu0 0.0
        %1062 = vmatpush2.msra.mxu0 0.0
        %1063 = vmatprep.subr.mxu0 0.0
        %1064 = vmatpush2.msra.mxu0 0.0
        %1065 = vmatprep.mubr.f32.mxu0 0.0
        %1066 = vmatmul.mubr.f32.gmra.mxu0 %v999
        %v1067 = vpop.f32.mrf.mxu0
        %v1068 = vadd.f32 0.0, %v1067
        %v1069 = vpop.f32.mrf.mxu0
        %1070 = vdwg.mxu0
        %v1071 = vadd.f32 %v828, %v1068
        %1072 = vrot.lane.b32.xlu0 %v348, 104
        %v1073 = vpop.permute.xlu0 %1072
        %1074 = vrot.lane.b32.xlu0 %v348, 72
        %v1075 = vpop.permute.xlu0 %1074
        %v1076 = vsel %vm354, %v1073, 0
        %v1078 = vsel %vm354, %v1075, 0
        %1080 = vmatprep.subr.mxu0 0.0
        %1081 = vmatpush1.xpose.msra.mxu0 0.0
        %1082 = vmatprep.subr.mxu0 0.0
        %1083 = vmatpush1.xpose.msra.mxu0 0.0
        %1084 = vmatprep.subr.mxu0 0.0
        %1085 = vmatpush1.xpose.msra.mxu0 0.0
        %1086 = vmatprep.subr.mxu0 0.0
        %1087 = vmatpush1.xpose.msra.mxu0 0.0
        %1088 = vmatprep.subr.mxu0 0.0
        %1089 = vmatpush1.xpose.msra.mxu0 0.0
        %1090 = vmatprep.subr.mxu0 0.0
        %1091 = vmatpush1.xpose.msra.mxu0 0.0
        %1092 = vmatprep.subr.mxu0 0.0
        %1093 = vmatpush1.xpose.msra.mxu0 0.0
        %1094 = vmatprep.subr.mxu0 0.0
        %1095 = vmatpush1.xpose.msra.mxu0 0.0
        %1096 = vmatprep.subr.mxu0 0.0
        %1097 = vmatpush1.xpose.msra.mxu0 0.0
        %1098 = vmatprep.subr.mxu0 0.0
        %1099 = vmatpush1.xpose.msra.mxu0 0.0
        %1100 = vmatprep.subr.mxu0 0.0
        %1101 = vmatpush1.xpose.msra.mxu0 0.0
        %1102 = vmatprep.subr.mxu0 0.0
        %1103 = vmatpush1.xpose.msra.mxu0 0.0
        %1104 = vmatprep.subr.mxu0 0.0
        %1105 = vmatpush1.xpose.msra.mxu0 0.0
        %1106 = vmatprep.subr.mxu0 0.0
        %1107 = vmatpush1.xpose.msra.mxu0 0.0
        %1108 = vmatprep.subr.mxu0 0.0
        %1109 = vmatpush1.xpose.msra.mxu0 0.0
        %1110 = vmatprep.subr.mxu0 0.0
        %1111 = vmatpush1.xpose.msra.mxu0 %v1078
        %1112 = vmatprep.subr.mxu0 0.0
        %1113 = vmatpush2.xpose.msra.mxu0 0.0
        %1114 = vmatprep.subr.mxu0 0.0
        %1115 = vmatpush2.xpose.msra.mxu0 0.0
        %1116 = vmatprep.subr.mxu0 0.0
        %1117 = vmatpush2.xpose.msra.mxu0 0.0
        %1118 = vmatprep.subr.mxu0 0.0
        %1119 = vmatpush2.xpose.msra.mxu0 0.0
        %1120 = vmatprep.subr.mxu0 0.0
        %1121 = vmatpush2.xpose.msra.mxu0 0.0
        %1122 = vmatprep.subr.mxu0 0.0
        %1123 = vmatpush2.xpose.msra.mxu0 0.0
        %1124 = vmatprep.subr.mxu0 0.0
        %1125 = vmatpush2.xpose.msra.mxu0 0.0
        %1126 = vmatprep.subr.mxu0 0.0
        %1127 = vmatpush2.xpose.msra.mxu0 0.0
        %1128 = vmatprep.subr.mxu0 0.0
        %1129 = vmatpush2.xpose.msra.mxu0 0.0
        %1130 = vmatprep.subr.mxu0 0.0
        %1131 = vmatpush2.xpose.msra.mxu0 0.0
        %1132 = vmatprep.subr.mxu0 0.0
        %1133 = vmatpush2.xpose.msra.mxu0 0.0
        %1134 = vmatprep.subr.mxu0 0.0
        %1135 = vmatpush2.xpose.msra.mxu0 0.0
        %1136 = vmatprep.subr.mxu0 0.0
        %1137 = vmatpush2.xpose.msra.mxu0 0.0
        %1138 = vmatprep.subr.mxu0 0.0
        %1139 = vmatpush2.xpose.msra.mxu0 0.0
        %1140 = vmatprep.subr.mxu0 0.0
        %1141 = vmatpush2.xpose.msra.mxu0 0.0
        %1142 = vmatprep.subr.mxu0 0.0
        %1143 = vmatpush2.xpose.msra.mxu0 0.0
        %1144 = vmatprep.mubr.f32.mxu0 0.0
        %1145 = vmatmul.mubr.f32.gmra.mxu0 %v1076
        %v1146 = vpop.f32.mrf.mxu0
        %v1147 = vadd.f32 0.0, %v1146
        %v1148 = vpop.f32.mrf.mxu0
        %1149 = vdwg.mxu0
        %v1150 = vmul.f32 %v1147, 0.35355338
        %v1151 = vsel %vm354, %v1150, -inf
        %1152 = vmax.xlane.f32.xlu0 %v1151
        %v1153 = vpop.xlane.xlu0 %1152
        %v1154 = vsub.f32 %v1150, %v1153
        %v1155 = vmul.f32 %v1154, 1.442695
        %v1156 = vpow.pop %v1155
        %v1157 = vsel %vm354, %v1156, 0.0
        %1158 = vadd.xlane.f32.xlu0 %v1157
        %v1159 = vpop.xlane.xlu0 %1158
        %v1160 = vrcp.pop %v1159
        %v1161 = vmul.f32 %v1156, %v1160
        %1162 = vrot.lane.b32.xlu0 %v348, 40
        %v1163 = vpop.permute.xlu0 %1162
        %v1166 = vsel %vm354, %v1161, 0
        %1168 = vmatprep.subr.mxu0 0.0
        %1169 = vmatpush1.msra.mxu0 0.0
        %1170 = vmatprep.subr.mxu0 0.0
        %1171 = vmatpush1.msra.mxu0 0.0
        %1172 = vmatprep.subr.mxu0 0.0
        %1173 = vmatpush1.msra.mxu0 0.0
        %1174 = vmatprep.subr.mxu0 0.0
        %1175 = vmatpush1.msra.mxu0 0.0
        %1176 = vmatprep.subr.mxu0 0.0
        %1177 = vmatpush1.msra.mxu0 0.0
        %1178 = vmatprep.subr.mxu0 0.0
        %1179 = vmatpush1.msra.mxu0 0.0
        %1180 = vmatprep.subr.mxu0 0.0
        %1181 = vmatpush1.msra.mxu0 0.0
        %1182 = vmatprep.subr.mxu0 0.0
        %1183 = vmatpush1.msra.mxu0 0.0
        %1184 = vmatprep.subr.mxu0 0.0
        %1185 = vmatpush1.msra.mxu0 0.0
        %1186 = vmatprep.subr.mxu0 0.0
        %1187 = vmatpush1.msra.mxu0 0.0
        %1188 = vmatprep.subr.mxu0 0.0
        %1189 = vmatpush1.msra.mxu0 0.0
        %1190 = vmatprep.subr.mxu0 0.0
        %1191 = vmatpush1.msra.mxu0 0.0
        %1192 = vmatprep.subr.mxu0 0.0
        %1193 = vmatpush1.msra.mxu0 0.0
        %1194 = vmatprep.subr.mxu0 0.0
        %1195 = vmatpush1.msra.mxu0 0.0
        %1196 = vmatprep.subr.mxu0 0.0
        %1197 = vmatpush1.msra.mxu0 0.0
        %1198 = vmatprep.subr.mxu0 0.0
        %1199 = vmatpush1.msra.mxu0 %v1163
        %1200 = vmatprep.subr.mxu0 0.0
        %1201 = vmatpush2.msra.mxu0 0.0
        %1202 = vmatprep.subr.mxu0 0.0
        %1203 = vmatpush2.msra.mxu0 0.0
        %1204 = vmatprep.subr.mxu0 0.0
        %1205 = vmatpush2.msra.mxu0 0.0
        %1206 = vmatprep.subr.mxu0 0.0
        %1207 = vmatpush2.msra.mxu0 0.0
        %1208 = vmatprep.subr.mxu0 0.0
        %1209 = vmatpush2.msra.mxu0 0.0
        %1210 = vmatprep.subr.mxu0 0.0
        %1211 = vmatpush2.msra.mxu0 0.0
        %1212 = vmatprep.subr.mxu0 0.0
        %1213 = vmatpush2.msra.mxu0 0.0
        %1214 = vmatprep.subr.mxu0 0.0
        %1215 = vmatpush2.msra.mxu0 0.0
        %1216 = vmatprep.subr.mxu0 0.0
        %1217 = vmatpush2.msra.mxu0 0.0
        %1218 = vmatprep.subr.mxu0 0.0
        %1219 = vmatpush2.msra.mxu0 0.0
        %1220 = vmatprep.subr.mxu0 0.0
        %1221 = vmatpush2.msra.mxu0 0.0
        %1222 = vmatprep.subr.mxu0 0.0
        %1223 = vmatpush2.msra.mxu0 0.0
        %1224 = vmatprep.subr.mxu0 0.0
        %1225 = vmatpush2.msra.mxu0 0.0
        %1226 = vmatprep.subr.mxu0 0.0
        %1227 = vmatpush2.msra.mxu0 0.0
        %1228 = vmatprep.subr.mxu0 0.0
        %1229 = vmatpush2.msra.mxu0 0.0
        %1230 = vmatprep.subr.mxu0 0.0
        %1231 = vmatpush2.msra.mxu0 0.0
        %1232 = vmatprep.mubr.f32.mxu0 0.0
        %1233 = vmatmul.mubr.f32.gmra.mxu0 %v1166
        %v1234 = vpop.f32.mrf.mxu0
        %v1235 = vadd.f32 0.0, %v1234
        %v1236 = vpop.f32.mrf.mxu0
        %1237 = vdwg.mxu0
        %v1238 = vld [vmem:[%s2 + $0x18] sm:$0xff]
        %v1240 = vsel %vm354, %v1235, 0
        %1242 = vmatprep.subr.mxu0 0.0
        %1243 = vmatpush1.msra.mxu0 0.0
        %1244 = vmatprep.subr.mxu0 0.0
        %1245 = vmatpush1.msra.mxu0 0.0
        %1246 = vmatprep.subr.mxu0 0.0
        %1247 = vmatpush1.msra.mxu0 0.0
        %1248 = vmatprep.subr.mxu0 0.0
        %1249 = vmatpush1.msra.mxu0 0.0
        %1250 = vmatprep.subr.mxu0 0.0
        %1251 = vmatpush1.msra.mxu0 0.0
        %1252 = vmatprep.subr.mxu0 0.0
        %1253 = vmatpush1.msra.mxu0 0.0
        %1254 = vmatprep.subr.mxu0 0.0
        %1255 = vmatpush1.msra.mxu0 0.0
        %1256 = vmatprep.subr.mxu0 0.0
        %1257 = vmatpush1.msra.mxu0 0.0
        %1258 = vmatprep.subr.mxu0 0.0
        %1259 = vmatpush1.msra.mxu0 0.0
        %1260 = vmatprep.subr.mxu0 0.0
        %1261 = vmatpush1.msra.mxu0 0.0
        %1262 = vmatprep.subr.mxu0 0.0
        %1263 = vmatpush1.msra.mxu0 0.0
        %1264 = vmatprep.subr.mxu0 0.0
        %1265 = vmatpush1.msra.mxu0 0.0
        %1266 = vmatprep.subr.mxu0 0.0
        %1267 = vmatpush1.msra.mxu0 0.0
        %1268 = vmatprep.subr.mxu0 0.0
        %1269 = vmatpush1.msra.mxu0 0.0
        %1270 = vmatprep.subr.mxu0 0.0
        %1271 = vmatpush1.msra.mxu0 0.0
        %1272 = vmatprep.subr.mxu0 0.0
        %1273 = vmatpush1.msra.mxu0 %v1238
        %1274 = vmatprep.subr.mxu0 0.0
        %1275 = vmatpush2.msra.mxu0 0.0
        %1276 = vmatprep.subr.mxu0 0.0
        %1277 = vmatpush2.msra.mxu0 0.0
        %1278 = vmatprep.subr.mxu0 0.0
        %1279 = vmatpush2.msra.mxu0 0.0
        %1280 = vmatprep.subr.mxu0 0.0
        %1281 = vmatpush2.msra.mxu0 0.0
        %1282 = vmatprep.subr.mxu0 0.0
        %1283 = vmatpush2.msra.mxu0 0.0
        %1284 = vmatprep.subr.mxu0 0.0
        %1285 = vmatpush2.msra.mxu0 0.0
        %1286 = vmatprep.subr.mxu0 0.0
        %1287 = vmatpush2.msra.mxu0 0.0
        %1288 = vmatprep.subr.mxu0 0.0
        %1289 = vmatpush2.msra.mxu0 0.0
        %1290 = vmatprep.subr.mxu0 0.0
        %1291 = vmatpush2.msra.mxu0 0.0
        %1292 = vmatprep.subr.mxu0 0.0
        %1293 = vmatpush2.msra.mxu0 0.0
        %1294 = vmatprep.subr.mxu0 0.0
        %1295 = vmatpush2.msra.mxu0 0.0
        %1296 = vmatprep.subr.mxu0 0.0
        %1297 = vmatpush2.msra.mxu0 0.0
        %1298 = vmatprep.subr.mxu0 0.0
        %1299 = vmatpush2.msra.mxu0 0.0
        %1300 = vmatprep.subr.mxu0 0.0
        %1301 = vmatpush2.msra.mxu0 0.0
        %1302 = vmatprep.subr.mxu0 0.0
        %1303 = vmatpush2.msra.mxu0 0.0
        %1304 = vmatprep.subr.mxu0 0.0
        %1305 = vmatpush2.msra.mxu0 0.0
        %1306 = vmatprep.mubr.f32.mxu0 0.0
        %1307 = vmatmul.mubr.f32.gmra.mxu0 %v1240
        %v1308 = vpop.f32.mrf.mxu0
        %v1309 = vadd.f32 0.0, %v1308
        %v1310 = vpop.f32.mrf.mxu0
        %1311 = vdwg.mxu0
        %v1312 = vadd.f32 %v1071, %v1309
        %v1313 = vlaneseq
        %v1314 = vshrl.u32 %v1313, 7
        %v1315 = vsub.s32 1, %v1314
        %v1316 = vrot.slane %v268, %v1315
        %v1317 = vadd.f32 %v1312, %v1316
        %v1318 = vadd.f32 %v267, %v1317
        %v1319 = vsel %vm277, %v1318, 0.0
        %1320 = vadd.xlane.f32.xlu0 %v1319
        %v1321 = vpop.xlane.xlu0 %1320
        %v1322 = vrcp.pop 32.0
        %v1323 = vmul.f32 %v1321, %v1322
        %v1324 = vsub.f32 %v1318, %v1323
        %v1325 = vmul.f32 %v1324, %v1324
        %v1326 = vsel %vm277, %v1325, 0.0
        %1327 = vadd.xlane.f32.xlu0 %v1326
        %v1328 = vpop.xlane.xlu0 %1327
        %v1329 = vmul.f32 %v1328, %v1322
        %v1330 = vadd.f32 %v1329, 1e-05
        %v1331 = vrsqrt.pop %v1330
        %v1332 = vmul.f32 %v1324, %v1331
        %v1333 = vlaneseq
        %v1334 = vshrl.u32 %v1333, 7
        %v1335 = vsub.s32 2, %v1334
        %v1336 = vrot.slane %v268, %v1335
        %v1337 = vmul.f32 %v1332, %v1336
        %v1338 = vlaneseq
        %v1339 = vshrl.u32 %v1338, 7
        %v1340 = vsub.s32 3, %v1339
        %v1341 = vrot.slane %v268, %v1340
        %v1342 = vadd.f32 %v1337, %v1341
        %v1343 = vld [vmem:[%s3] sm:$0xff]
        %v1344 = vld [vmem:[%s3 + $0x8] sm:$0xff]
        %v1345 = vld [vmem:[%s3 + $0x10] sm:$0xff]
        %v1346 = vld [vmem:[%s3 + $0x18] sm:$0xff]
        %v1347 = vlaneseq
        %v1348 = vshrl.u32 %v1347, 7
        %v1349 = vsub.s32 4, %v1348
        %v1350 = vrot.slane %v268, %v1349
        %v1352 = vsel %vm277, %v1342, 0
        %1354 = vmatprep.subr.mxu0 0.0
        %1355 = vmatpush1.msra.mxu0 0.0
        %1356 = vmatprep.subr.mxu0 0.0
        %1357 = vmatpush1.msra.mxu0 0.0
        %1358 = vmatprep.subr.mxu0 0.0
        %1359 = vmatpush1.msra.mxu0 0.0
        %1360 = vmatprep.subr.mxu0 0.0
        %1361 = vmatpush1.msra.mxu0 0.0
        %1362 = vmatprep.subr.mxu0 0.0
        %1363 = vmatpush1.msra.mxu0 0.0
        %1364 = vmatprep.subr.mxu0 0.0
        %1365 = vmatpush1.msra.mxu0 0.0
        %1366 = vmatprep.subr.mxu0 0.0
        %1367 = vmatpush1.msra.mxu0 0.0
        %1368 = vmatprep.subr.mxu0 0.0
        %1369 = vmatpush1.msra.mxu0 0.0
        %1370 = vmatprep.subr.mxu0 0.0
        %1371 = vmatpush1.msra.mxu0 0.0
        %1372 = vmatprep.subr.mxu0 0.0
        %1373 = vmatpush1.msra.mxu0 0.0
        %1374 = vmatprep.subr.mxu0 0.0
        %1375 = vmatpush1.msra.mxu0 0.0
        %1376 = vmatprep.subr.mxu0 0.0
        %1377 = vmatpush1.msra.mxu0 0.0
        %1378 = vmatprep.subr.mxu0 0.0
        %1379 = vmatpush1.msra.mxu0 %v1346
        %1380 = vmatprep.subr.mxu0 0.0
        %1381 = vmatpush1.msra.mxu0 %v1345
        %1382 = vmatprep.subr.mxu0 0.0
        %1383 = vmatpush1.msra.mxu0 %v1344
        %1384 = vmatprep.subr.mxu0 0.0
        %1385 = vmatpush1.msra.mxu0 %v1343
        %1386 = vmatprep.subr.mxu0 0.0
        %1387 = vmatpush2.msra.mxu0 0.0
        %1388 = vmatprep.subr.mxu0 0.0
        %1389 = vmatpush2.msra.mxu0 0.0
        %1390 = vmatprep.subr.mxu0 0.0
        %1391 = vmatpush2.msra.mxu0 0.0
        %1392 = vmatprep.subr.mxu0 0.0
        %1393 = vmatpush2.msra.mxu0 0.0
        %1394 = vmatprep.subr.mxu0 0.0
        %1395 = vmatpush2.msra.mxu0 0.0
        %1396 = vmatprep.subr.mxu0 0.0
        %1397 = vmatpush2.msra.mxu0 0.0
        %1398 = vmatprep.subr.mxu0 0.0
        %1399 = vmatpush2.msra.mxu0 0.0
        %1400 = vmatprep.subr.mxu0 0.0
        %1401 = vmatpush2.msra.mxu0 0.0
        %1402 = vmatprep.subr.mxu0 0.0
        %1403 = vmatpush2.msra.mxu0 0.0
        %1404 = vmatprep.subr.mxu0 0.0
        %1405 = vmatpush2.msra.mxu0 0.0
        %1406 = vmatprep.subr.mxu0 0.0
        %1407 = vmatpush2.msra.mxu0 0.0
        %1408 = vmatprep.subr.mxu0 0.0
        %1409 = vmatpush2.msra.mxu0 0.0
        %1410 = vmatprep.subr.mxu0 0.0
        %1411 = vmatpush2.msra.mxu0 0.0
        %1412 = vmatprep.subr.mxu0 0.0
        %1413 = vmatpush2.msra.mxu0 0.0
        %1414 = vmatprep.subr.mxu0 0.0
        %1415 = vmatpush2.msra.mxu0 0.0
        %1416 = vmatprep.subr.mxu0 0.0
        %1417 = vmatpush2.msra.mxu0 0.0
        %1418 = vmatprep.mubr.f32.mxu0 0.0
        %1419 = vmatmul.mubr.f32.gmra.mxu0 %v1352
        %v1420 = vpop.f32.mrf.mxu0
        %v1421 = vadd.f32 %v1350, %v1420
        %v1422 = vpop.f32.mrf.mxu0
        %1423 = vdwg.mxu0
        %v1424 = vmax.f32 %v1421, 0.0
        %v1425 = vld [vmem:[%s4] sm:$0xff]
        %v1426 = vld [vmem:[%s4 + $0x8] sm:$0xff]
        %v1427 = vld [vmem:[%s4 + $0x10] sm:$0xff]
        %v1428 = vld [vmem:[%s4 + $0x18] sm:$0xff]
        %v1429 = vld [vmem:[%s4 + $0x20] sm:$0xff]
        %v1430 = vld [vmem:[%s4 + $0x28] sm:$0xff]
        %v1431 = vld [vmem:[%s4 + $0x30] sm:$0xff]
        %v1432 = vld [vmem:[%s4 + $0x38] sm:$0xff]
        %v1433 = vlaneseq
        %v1434 = vshrl.u32 %v1433, 7
        %v1435 = vsub.s32 5, %v1434
        %v1436 = vrot.slane %v268, %v1435
        %vm1437 = vcmask 523264
        %v1439 = vsel %vm1437, %v1424, 0
        %1441 = vmatprep.subr.mxu0 0.0
        %1442 = vmatpush1.msra.mxu0 0.0
        %1443 = vmatprep.subr.mxu0 0.0
        %1444 = vmatpush1.msra.mxu0 0.0
        %1445 = vmatprep.subr.mxu0 0.0
        %1446 = vmatpush1.msra.mxu0 0.0
        %1447 = vmatprep.subr.mxu0 0.0
        %1448 = vmatpush1.msra.mxu0 0.0
        %1449 = vmatprep.subr.mxu0 0.0
        %1450 = vmatpush1.msra.mxu0 0.0
        %1451 = vmatprep.subr.mxu0 0.0
        %1452 = vmatpush1.msra.mxu0 0.0
        %1453 = vmatprep.subr.mxu0 0.0
        %1454 = vmatpush1.msra.mxu0 0.0
        %1455 = vmatprep.subr.mxu0 0.0
        %1456 = vmatpush1.msra.mxu0 0.0
        %1457 = vmatprep.subr.mxu0 0.0
        %1458 = vmatpush1.msra.mxu0 %v1432
        %1459 = vmatprep.subr.mxu0 0.0
        %1460 = vmatpush1.msra.mxu0 %v1431
        %1461 = vmatprep.subr.mxu0 0.0
        %1462 = vmatpush1.msra.mxu0 %v1430
        %1463 = vmatprep.subr.mxu0 0.0
        %1464 = vmatpush1.msra.mxu0 %v1429
        %1465 = vmatprep.subr.mxu0 0.0
        %1466 = vmatpush1.msra.mxu0 %v1428
        %1467 = vmatprep.subr.mxu0 0.0
        %1468 = vmatpush1.msra.mxu0 %v1427
        %1469 = vmatprep.subr.mxu0 0.0
        %1470 = vmatpush1.msra.mxu0 %v1426
        %1471 = vmatprep.subr.mxu0 0.0
        %1472 = vmatpush1.msra.mxu0 %v1425
        %1473 = vmatprep.subr.mxu0 0.0
        %1474 = vmatpush2.msra.mxu0 0.0
        %1475 = vmatprep.subr.mxu0 0.0
        %1476 = vmatpush2.msra.mxu0 0.0
        %1477 = vmatprep.subr.mxu0 0.0
        %1478 = vmatpush2.msra.mxu0 0.0
        %1479 = vmatprep.subr.mxu0 0.0
        %1480 = vmatpush2.msra.mxu0 0.0
        %1481 = vmatprep.subr.mxu0 0.0
        %1482 = vmatpush2.msra.mxu0 0.0
        %1483 = vmatprep.subr.mxu0 0.0
        %1484 = vmatpush2.msra.mxu0 0.0
        %1485 = vmatprep.subr.mxu0 0.0
        %1486 = vmatpush2.msra.mxu0 0.0
        %1487 = vmatprep.subr.mxu0 0.0
        %1488 = vmatpush2.msra.mxu0 0.0
        %1489 = vmatprep.subr.mxu0 0.0
        %1490 = vmatpush2.msra.mxu0 0.0
        %1491 = vmatprep.subr.mxu0 0.0
        %1492 = vmatpush2.msra.mxu0 0.0
        %1493 = vmatprep.subr.mxu0 0.0
        %1494 = vmatpush2.msra.mxu0 0.0
        %1495 = vmatprep.subr.mxu0 0.0
        %1496 = vmatpush2.msra.mxu0 0.0
        %1497 = vmatprep.subr.mxu0 0.0
        %1498 = vmatpush2.msra.mxu0 0.0
        %1499 = vmatprep.subr.mxu0 0.0
        %1500 = vmatpush2.msra.mxu0 0.0
        %1501 = vmatprep.subr.mxu0 0.0
        %1502 = vmatpush2.msra.mxu0 0.0
        %1503 = vmatprep.subr.mxu0 0.0
        %1504 = vmatpush2.msra.mxu0 0.0
        %1505 = vmatprep.mubr.f32.mxu0 0.0
        %1506 = vmatmul.mubr.f32.gmra.mxu0 %v1439
        %v1507 = vpop.f32.mrf.mxu0
        %v1508 = vadd.f32 %v1436, %v1507
        %v1509 = vpop.f32.mrf.mxu0
        %1510 = vdwg.mxu0
        %v1511 = vadd.f32 %v1342, %v1508
        %v1512 = vsel %vm277, %v1511, 0.0
        %1513 = vadd.xlane.f32.xlu0 %v1512
        %v1514 = vpop.xlane.xlu0 %1513
        %v1515 = vmul.f32 %v1514, %v1322
        %v1516 = vsub.f32 %v1511, %v1515
        %v1517 = vmul.f32 %v1516, %v1516
        %v1518 = vsel %vm277, %v1517, 0.0
        %1519 = vadd.xlane.f32.xlu0 %v1518
        %v1520 = vpop.xlane.xlu0 %1519
        %v1521 = vmul.f32 %v1520, %v1322
        %v1522 = vadd.f32 %v1521, 1e-05
        %v1523 = vrsqrt.pop %v1522
        %v1524 = vmul.f32 %v1516, %v1523
        %v1525 = vmul.f32 %v1524, %v1336
        %v1526 = vadd.f32 %v1525, %v1341
        %v1528 = vrot.slane %v1526, 1
        %1529 = vrot.lane.b32.xlu0 %v1528, 32
        %v1530 = vpop.permute.xlu0 %1529
        %v1532 = vrot.slane %v1526, 2
        %1533 = vrot.lane.b32.xlu0 %v1532, 64
        %v1534 = vpop.permute.xlu0 %1533
        %v1536 = vrot.slane %v1526, 3
        %1537 = vrot.lane.b32.xlu0 %v1536, 96
        %v1538 = vpop.permute.xlu0 %1537
        %v1540 = vsel %vm277, %v1526, %v1530
        %v1541 = vsel %vm1437, %v1540, %v1534
        %vm1542 = vcmask 785408
        %v1543 = vsel %vm1542, %v1541, %v1538
        %v1545 = vrot.slane %v1543, 3
        %vm1547 = vcmask 1040384
        %v1548 = vsel %vm1547, %v1543, %v1545
        %1549 = vst [vmem:[%s266] sm:$0x3] %v1548
        %s1550 = sand.u32 %s162, 1
        %s1551 = scalar_lea.sflag [#allocation4], %s1550
        %s1552 = sand.u32 %s162, 1
        %s1553 = smul.addr %s1552, 2
        %s1554 = scalar_lea.vmem [#allocation5], %s1553
        // Predicated region
        $region49: #{tpu_custom_call.1} parent=43 // pred_check
          %p1555 = pneg %p172
        $region50: #{tpu_custom_call.1} parent=43 // pred_check_branch
          %1557 = sbr.rel (%p1555) target = $region52
        $region51: #{tpu_custom_call.1} parent=43 // pred_region
          %s1559 = ssub.s32 32, 32
          %1560 = vsyncadd %s1551, %s1559
          %s1561 = smul.addr %s23, 32
          %s1562 = scalar_lea.hbm %s6, %s1561
          %s1564 = sshll.u32 %s1554, 4
          %s1565 = int_to_ptr.vmem [resolvable:$true] %s1564
          %1567 = dma.vmem_to_hbm [thread:$0]  %s1565, 32, %s1562, %s1551
        $region52: #{tpu_custom_call.1} parent=43 // pred_fallthru
          _
      $region44: #{tpu_custom_call.1} parent=5 // pred_fallthru
        _
      %p1568 = scmp.le.s32.totalorder 2, %s18
      // Predicated region
      $region53: #{tpu_custom_call.1} parent=5 // pred_check
        %p1569 = pneg %p1568
      $region54: #{tpu_custom_call.1} parent=5 // pred_check_branch
        %1571 = sbr.rel (%p1569) target = $region56
      $region55: #{tpu_custom_call.1} parent=5 // pred_region
        %s1572 = ssub.s32 %s18, 2
        // Predicated region
        $region57: #{tpu_custom_call.1} parent=55 // pred_check
          %p1573 = pneg %p178
        $region58: #{tpu_custom_call.1} parent=55 // pred_check_branch
          %1575 = sbr.rel (%p1573) target = $region60
        $region59: #{tpu_custom_call.1} parent=55 // pred_region
          %s1576 = sand.u32 %s163, 1
          %s1577 = scalar_lea.sflag [#allocation4], %s1576
          %s1578 = sand.u32 %s163, 1
          %s1579 = smul.addr %s1578, 2
          %s1580 = scalar_lea.vmem [#allocation5], %s1579
          %1581 = dma.done %s1577, 32
        $region60: #{tpu_custom_call.1} parent=55 // pred_fallthru
          _
      $region56: #{tpu_custom_call.1} parent=5 // pred_fallthru
        _
    $region6: #{tpu_custom_call.1} parent=1 // loop_footer
      %s22 = sadd.s32 1, %s18
    $region7: #{tpu_custom_call.1} parent=1 // loop_footer_branch
      %17 = sbr.rel target = $region3
    $region8: #{tpu_custom_call.1} parent=1 // loop_exit
      _
    %1582 = vsyncpa [#allocation3], 1
    %s1583 = scalar_lea.sflag [#allocation3], 1
    %1584 = vsyncpa %s1583, 1
    %1585 = vsyncpa [#allocation4], 1
    %s1586 = scalar_lea.sflag [#allocation4], 1
    %1587 = vsyncpa %s1586, 1

</llo_original>
